<compile_context>
chip_gen: v5e
topology: v5e:2x2
jax: 0.10.0
libtpu: 0.0.40
codegen_flags: <defaults>
</compile_context>

<pallas_src>
from functools import partial

import jax
import jax.numpy as jnp
from jax import lax
from jax.experimental import pallas as pl
from jax.experimental.pallas import tpu as pltpu

_LOG2E = 1.4426950408889634  # log2(e): folded into Wq so stage 2 can use exp2.
_MASK_VALUE = -1e30          # finite "minus infinity" for padded-key masking.


# ---------------------------------------------------------------------------
# Small host-side helpers.
# ---------------------------------------------------------------------------
def _round_up(x, m):
    return ((x + m - 1) // m) * m


def _largest_tile(n, candidates):
    """Largest candidate that evenly divides n (n is a multiple of 128)."""
    for t in candidates:
        if n % t == 0:
            return t
    return n


def _pick_head_group(num_heads, head_dim):
    """Smallest divisor G of H with G*D >= 256 (wide MXU tiles); else all heads."""
    for g in range(1, num_heads + 1):
        if num_heads % g == 0 and g * head_dim >= 256:
            return g
    return num_heads


def _vmem_limit_bytes(block_bytes, scratch_bytes=0):
    """Budget = double-buffered pipelined blocks + scratch + headroom."""
    need = 2 * sum(block_bytes) + scratch_bytes + (4 << 20)
    return int(min(max(need, 32 << 20), 128 << 20))


def prepare_qkv_params(wq_t, bq, wk_t, bk, wv_t, bv, *, num_heads):
    """One-time repack (call at model init, NOT per forward).

    Returns
      w_heads : (H//G, E, 3*G*D)  fused [Wq_g | Wk_g | Wv_g] per head group,
                with the softmax scale * log2(e) folded into the Q columns.
      b_heads : (H//G, 1, 3*G*D)  fused bias, Q part scaled identically.
    """
    e = wq_t.shape[0]
    d = e // num_heads
    g = _pick_head_group(num_heads, d)
    hg = num_heads // g

    scale = _LOG2E / (d ** 0.5)
    wq_s, bq_s = wq_t * scale, bq * scale

    def split_w(w):  # (E, E) -> (HG, E, G*D); column order preserved per group.
        return w.reshape(e, hg, g * d).transpose(1, 0, 2)

    def split_b(b):  # (1, E) -> (HG, 1, G*D)
        return jnp.reshape(b, (hg, 1, g * d))

    w_heads = jnp.concatenate([split_w(wq_s), split_w(wk_t), split_w(wv_t)], axis=-1)
    b_heads = jnp.concatenate([split_b(bq_s), split_b(bk), split_b(bv)], axis=-1)
    return w_heads, b_heads


# ---------------------------------------------------------------------------
# Stage 1: fused, head-grouped QKV projection (grid = (B, S tiles, head groups)).
# ---------------------------------------------------------------------------
def _qkv_proj_kernel(x_ref, w_ref, b_ref, q_ref, k_ref, v_ref, *, group, head_dim):
    """x_ref: (ts, E); w_ref: (E, 3*G*D); b_ref: (1, 3*G*D); q/k/v_ref: (G, ts, D)."""
    g, d = group, head_dim
    x = x_ref[...]
    # One fused MXU matmul for Q, K, V of all G heads in this group
    # (f32 accumulation), one broadcast bias add.  Q columns already carry
    # the log2(e)/sqrt(D) softmax scale.
    qkv = jnp.dot(x, w_ref[...], preferred_element_type=jnp.float32) + b_ref[...]
    for i in range(g):  # static unrolled slab writes (full (ts, D) rows)
        q_ref[i] = qkv[:, i * d:(i + 1) * d].astype(q_ref.dtype)
        k_ref[i] = qkv[:, (g + i) * d:(g + i + 1) * d].astype(k_ref.dtype)
        v_ref[i] = qkv[:, (2 * g + i) * d:(2 * g + i + 1) * d].astype(v_ref.dtype)


# ---------------------------------------------------------------------------
# Stage 2: flash attention, resident K/V, exp2 online softmax.
# Grid = (B, H, query tiles, KV tiles); KV axis is the reduction.
# ---------------------------------------------------------------------------
def _flash_attn_kernel(q_ref, k_ref, v_ref, o_ref, m_sc, l_sc, acc_sc, *,
                       kv_tile, seq_len, padded_len, exp_dtype):
    """q_ref: (tq, D) pre-scaled (log2 domain); k/v_ref: (Sp, D) resident per (b,h);
    o_ref: (tq, D); m/l: (tq, 1) f32; acc: (tq, D) f32."""
    ki = pl.program_id(3)

    @pl.when(ki == 0)
    def _init():
        m_sc[...] = jnp.full(m_sc.shape, -jnp.inf, dtype=m_sc.dtype)
        l_sc[...] = jnp.zeros(l_sc.shape, dtype=l_sc.dtype)
        acc_sc[...] = jnp.zeros(acc_sc.shape, dtype=acc_sc.dtype)

    start = pl.multiple_of(ki * kv_tile, kv_tile)
    q = q_ref[...]                                  # (tq, D)
    k = k_ref[pl.ds(start, kv_tile), :]             # (tkv, D) slice of resident K
    v = v_ref[pl.ds(start, kv_tile), :]             # (tkv, D) slice of resident V

    # QK^T without transposing K: contract the D axis of both operands (MXU).
    # Result is already in the log2 domain (scale folded into Q).
    s = lax.dot_general(q, k, (((1,), (1,)), ((), ())),
                        preferred_element_type=jnp.float32)     # (tq, tkv)

    if padded_len != seq_len:  # static: mask padded key positions
        kpos = start + lax.broadcasted_iota(jnp.int32, s.shape, 1)
        s = jnp.where(kpos < seq_len, s, _MASK_VALUE)

    m_prev = m_sc[...]
    m_new = jnp.maximum(m_prev, jnp.max(s, axis=-1, keepdims=True))
    alpha = jnp.exp2(m_prev - m_new)                             # (tq, 1) rescale
    p = jnp.exp2((s - m_new).astype(exp_dtype))                  # unnormalized probs

    l_sc[...] = alpha * l_sc[...] + jnp.sum(p.astype(jnp.float32), axis=-1,
                                            keepdims=True)
    acc_sc[...] = alpha * acc_sc[...] + jnp.dot(
        p.astype(v_ref.dtype), v, preferred_element_type=jnp.float32)
    m_sc[...] = m_new

    @pl.when(ki == pl.num_programs(3) - 1)
    def _finalize():
        # Deferred softmax normalization on the otherwise-idle EUP slot.
        inv_l = pl.reciprocal(l_sc[...], approx=True)
        o_ref[...] = (acc_sc[...] * inv_l).astype(o_ref.dtype)


# ---------------------------------------------------------------------------
# Forward wrapper.
# ---------------------------------------------------------------------------
@partial(jax.jit, static_argnames=("num_heads",))
def multi_head_self_attention(x, w_heads, b_heads, *, num_heads):
    """x: (B, S, E); w_heads/b_heads from prepare_qkv_params."""
    B, S, E = x.shape
    H = num_heads
    assert E % H == 0, "embedding_size should be divisible by num_heads"
    D = E // H
    HG = w_heads.shape[0]
    G = H // HG
    assert w_heads.shape == (HG, E, 3 * G * D)
    itm = jnp.dtype(x.dtype).itemsize

    # Pad the sequence to a 128 multiple so every tile is lane/sublane aligned
    # (padded keys are masked in stage 2; padded query rows are sliced off).
    Sp = _round_up(S, 128)
    x_p = jnp.pad(x, ((0, 0), (0, Sp - S), (0, 0))) if Sp != S else x

    # ---- Stage 1: fused head-grouped QKV projection --------------------------
    ts = _largest_tile(Sp, (1024, 512, 256, 128))
    vmem1 = _vmem_limit_bytes(
        [ts * E * itm, E * 3 * G * D * itm, 3 * G * D * itm]
        + [G * ts * D * itm] * 3)

    q, k, v = pl.pallas_call(
        partial(_qkv_proj_kernel, group=G, head_dim=D),
        out_shape=[jax.ShapeDtypeStruct((B, H, Sp, D), x.dtype)] * 3,
        grid=(B, Sp // ts, HG),  # head-group innermost -> x tile resident across heads
        in_specs=[
            pl.BlockSpec((None, ts, E), lambda b, si, hg: (b, si, 0)),
            pl.BlockSpec((None, E, 3 * G * D), lambda b, si, hg: (hg, 0, 0)),
            pl.BlockSpec((None, 1, 3 * G * D), lambda b, si, hg: (hg, 0, 0)),
        ],
        out_specs=[
            pl.BlockSpec((None, G, ts, D), lambda b, si, hg: (b, hg, si, 0)),
        ] * 3,
        compiler_params=pltpu.CompilerParams(
            dimension_semantics=("parallel", "parallel", "parallel"),
            vmem_limit_bytes=vmem1,
        ),
    )(x_p, w_heads, b_heads)

    # ---- Stage 2: flash attention with resident K/V --------------------------
    # Tile choices are a reasonable default; sweep per TPU generation.
    tq = _largest_tile(Sp, (256, 128))
    tkv = _largest_tile(Sp, (512, 256, 128))
    grid = (B, H, Sp // tq, Sp // tkv)
    exp_dtype = jnp.bfloat16 if x.dtype == jnp.bfloat16 else jnp.float32

    kernel = partial(_flash_attn_kernel, kv_tile=tkv, seq_len=S,
                     padded_len=Sp, exp_dtype=exp_dtype)

    direct_bse = (D % 128 == 0)
    if direct_bse:
        # Write straight into (B, S, E): each head owns a 128-aligned lane range.
        out_shape = jax.ShapeDtypeStruct((B, Sp, E), x.dtype)
        out_spec = pl.BlockSpec((None, tq, D), lambda b, h, qi, ki: (b, qi, h))
    else:
        out_shape = jax.ShapeDtypeStruct((B, H, Sp, D), x.dtype)
        out_spec = pl.BlockSpec((None, None, tq, D), lambda b, h, qi, ki: (b, h, qi, 0))

    vmem2 = _vmem_limit_bytes(
        [tq * D * itm, Sp * D * itm, Sp * D * itm, tq * D * itm],
        scratch_bytes=tq * D * 4 + 2 * tq * 4)

    ctx = pl.pallas_call(
        kernel,
        out_shape=out_shape,
        grid=grid,
        in_specs=[
            pl.BlockSpec((None, None, tq, D), lambda b, h, qi, ki: (b, h, qi, 0)),
            # K/V: full-head blocks, index map ignores qi/ki -> resident, no re-DMA.
            pl.BlockSpec((None, None, Sp, D), lambda b, h, qi, ki: (b, h, 0, 0)),
            pl.BlockSpec((None, None, Sp, D), lambda b, h, qi, ki: (b, h, 0, 0)),
        ],
        out_specs=out_spec,
        scratch_shapes=[
            pltpu.VMEM((tq, 1), jnp.float32),   # running max (log2 domain)
            pltpu.VMEM((tq, 1), jnp.float32),   # running sum
            pltpu.VMEM((tq, D), jnp.float32),   # unnormalized accumulator
        ],
        compiler_params=pltpu.CompilerParams(
            dimension_semantics=("parallel", "parallel", "parallel", "arbitrary"),
            vmem_limit_bytes=vmem2,
        ),
    )(q, k, v)

    if direct_bse:
        return ctx[:, :S, :]
    # Same permute(0, 2, 1, 3).view as the PyTorch module (only needed when D < 128).
    return ctx[:, :, :S, :].transpose(0, 2, 1, 3).reshape(B, S, E)


# ---------------------------------------------------------------------------
# Pure-JAX reference mirroring the PyTorch forward.
# ---------------------------------------------------------------------------
def _reference(x, wq_t, bq, wk_t, bk, wv_t, bv, num_heads):
    B, S, E = x.shape
    D = E // num_heads
    q = x @ wq_t + bq
    k = x @ wk_t + bk
    v = x @ wv_t + bv
    q = q.reshape(B, S, num_heads, D).transpose(0, 2, 1, 3)
    k = k.reshape(B, S, num_heads, D).transpose(0, 2, 1, 3)
    v = v.reshape(B, S, num_heads, D).transpose(0, 2, 1, 3)
    scores = jnp.einsum("bhqd,bhkd->bhqk", q, k) / (D ** 0.5)
    probs = jax.nn.softmax(scores, axis=-1)
    ctx = jnp.einsum("bhqk,bhkd->bhqd", probs, v)
    return ctx.transpose(0, 2, 1, 3).reshape(B, S, E)


if __name__ == "__main__":
    # Small shapes consistent with the module: batch=2, seq=8, embed=32, heads=4.
    B, S, E, H = 2, 8, 32, 4

    key = jax.random.PRNGKey(0)
    kx, kq, kk, kv, kbq, kbk, kbv = jax.random.split(key, 7)

    x = jax.random.normal(kx, (B, S, E), dtype=jnp.float32)
    # nn.Linear(E, E, bias=True) parameters, stored pre-transposed as (E_in, E_out).
    wq_t = jax.random.normal(kq, (E, E), dtype=jnp.float32) * 0.05
    wk_t = jax.random.normal(kk, (E, E), dtype=jnp.float32) * 0.05
    wv_t = jax.random.normal(kv, (E, E), dtype=jnp.float32) * 0.05
    bq = jax.random.normal(kbq, (1, E), dtype=jnp.float32) * 0.05
    bk = jax.random.normal(kbk, (1, E), dtype=jnp.float32) * 0.05
    bv = jax.random.normal(kbv, (1, E), dtype=jnp.float32) * 0.05

    # One-time weight repack (hoisted out of the per-forward path).
    w_heads, b_heads = prepare_qkv_params(wq_t, bq, wk_t, bk, wv_t, bv, num_heads=H)

    out = multi_head_self_attention(x, w_heads, b_heads, num_heads=H)
    out = jax.block_until_ready(out)

    ref = _reference(x, wq_t, bq, wk_t, bk, wv_t, bv, H)
    assert out.shape == (B, S, E)
    max_err = float(jnp.max(jnp.abs(out - ref)))
    # Tolerance covers pl.reciprocal(approx=True) (~2^-12 relative) and the
    # log2(e)-folded scale rounding; math is otherwise f32-accumulated.
    assert jnp.allclose(out, ref, atol=2e-3, rtol=2e-3), f"mismatch vs reference: {max_err}"

    print("KERNEL_OK")
</pallas_src>

<mosaic_0001>
module attributes {stable_mosaic.version = 11 : i64} {
  func.func @_flash_attn_kernel(%arg0: i32, %arg1: i32, %arg2: i32, %arg3: i32, %arg4: memref<1x1x128x8xf32, #tpu.memory_space<vmem>>, %arg5: memref<1x1x128x8xf32, #tpu.memory_space<vmem>>, %arg6: memref<1x1x128x8xf32, #tpu.memory_space<vmem>>, %arg7: memref<1x1x128x8xf32, #tpu.memory_space<vmem>>, %arg8: memref<128x1xf32, #tpu.memory_space<vmem>>, %arg9: memref<128x1xf32, #tpu.memory_space<vmem>>, %arg10: memref<128x8xf32, #tpu.memory_space<vmem>>) attributes {dimension_semantics = [#tpu.dimension_semantics<parallel>, #tpu.dimension_semantics<parallel>, #tpu.dimension_semantics<parallel>, #tpu.dimension_semantics<arbitrary>], iteration_bounds = array<i64: 2, 4, 1, 1>, scalar_prefetch = 0 : i64, scratch_operands = 3 : i64, tpu.core_type = #tpu.core_type<tc>, window_params = [{transform_indices = @transform_0, window_bounds = array<i64: 1, 1, 128, 8>}, {transform_indices = @transform_1, window_bounds = array<i64: 1, 1, 128, 8>}, {transform_indices = @transform_2, window_bounds = array<i64: 1, 1, 128, 8>}, {transform_indices = @transform_3, window_bounds = array<i64: 1, 1, 128, 8>}]} {
    %c0_i32 = arith.constant 0 : i32
    %0 = arith.cmpi eq, %arg3, %c0_i32 : i32
    %1 = arith.extui %0 : i1 to i32
    %c0_i32_0 = arith.constant 0 : i32
    %2 = arith.cmpi ne, %1, %c0_i32_0 : i32
    scf.if %2 {
      %cst_28 = arith.constant 0xFF800000 : f32
      %46 = vector.broadcast %cst_28 : f32 to vector<128x1xf32>
      %c0_29 = arith.constant 0 : index
      %c0_30 = arith.constant 0 : index
      %47 = vector.load %arg8[%c0_29, %c0_30] : memref<128x1xf32, #tpu.memory_space<vmem>>, vector<128x1xf32>
      tpu.vector_store %arg8[%c0_29, %c0_30], %46 {strides = array<i32>} : memref<128x1xf32, #tpu.memory_space<vmem>>, vector<128x1xf32>,
      %cst_31 = arith.constant 0.000000e+00 : f32
      %48 = vector.broadcast %cst_31 : f32 to vector<128x1xf32>
      %c0_32 = arith.constant 0 : index
      %c0_33 = arith.constant 0 : index
      %49 = vector.load %arg9[%c0_32, %c0_33] : memref<128x1xf32, #tpu.memory_space<vmem>>, vector<128x1xf32>
      tpu.vector_store %arg9[%c0_32, %c0_33], %48 {strides = array<i32>} : memref<128x1xf32, #tpu.memory_space<vmem>>, vector<128x1xf32>,
      %cst_34 = arith.constant 0.000000e+00 : f32
      %50 = vector.broadcast %cst_34 : f32 to vector<128x8xf32>
      %c0_35 = arith.constant 0 : index
      %c0_36 = arith.constant 0 : index
      %51 = vector.load %arg10[%c0_35, %c0_36] : memref<128x8xf32, #tpu.memory_space<vmem>>, vector<128x8xf32>
      tpu.vector_store %arg10[%c0_35, %c0_36], %50 {strides = array<i32>} : memref<128x8xf32, #tpu.memory_space<vmem>>, vector<128x8xf32>,
    } else {
    }
    %c128_i32 = arith.constant 128 : i32
    %3 = arith.muli %arg3, %c128_i32 : i32
    %4 = tpu.assume_multiple %3, 128 : i32
    %c0 = arith.constant 0 : index
    %c0_1 = arith.constant 0 : index
    %c0_2 = arith.constant 0 : index
    %c0_3 = arith.constant 0 : index
    %5 = vector.load %arg4[%c0, %c0_1, %c0_2, %c0_3] : memref<1x1x128x8xf32, #tpu.memory_space<vmem>>, vector<1x1x128x8xf32>
    %6 = vector.shape_cast %5 : vector<1x1x128x8xf32> to vector<128x8xf32>
    %c0_4 = arith.constant 0 : index
    %c0_5 = arith.constant 0 : index
    %7 = arith.index_cast %4 : i32 to index
    %c0_6 = arith.constant 0 : index
    %8 = vector.load %arg5[%c0_4, %c0_5, %7, %c0_6] : memref<1x1x128x8xf32, #tpu.memory_space<vmem>>, vector<1x1x128x8xf32>
    %9 = vector.shape_cast %8 : vector<1x1x128x8xf32> to vector<128x8xf32>
    %c0_7 = arith.constant 0 : index
    %c0_8 = arith.constant 0 : index
    %10 = arith.index_cast %4 : i32 to index
    %c0_9 = arith.constant 0 : index
    %11 = vector.load %arg6[%c0_7, %c0_8, %10, %c0_9] : memref<1x1x128x8xf32, #tpu.memory_space<vmem>>, vector<1x1x128x8xf32>
    %12 = vector.shape_cast %11 : vector<1x1x128x8xf32> to vector<128x8xf32>
    %cst = arith.constant dense<0.000000e+00> : vector<128x128xf32>
    %13 = tpu.matmul %6, %9, %cst {dimension_numbers = #tpu.dot_dimension_numbers<[1], [1], [0], [0], [0, 0, 1, 0], [], []>} : vector<128x8xf32>, vector<128x8xf32>, vector<128x128xf32> -> vector<128x128xf32>
    %14 = tpu.iota {dimensions = array<i32: 1>} : vector<128x128xi32>
    %15 = vector.broadcast %4 : i32 to vector<128x128xi32>
    %16 = arith.addi %15, %14 : vector<128x128xi32>
    %c8_i32 = arith.constant 8 : i32
    %17 = vector.broadcast %c8_i32 : i32 to vector<128x128xi32>
    %18 = arith.cmpi slt, %16, %17 : vector<128x128xi32>
    %cst_10 = arith.constant -1.000000e+30 : f32
    %19 = vector.broadcast %cst_10 : f32 to vector<128x128xf32>
    %20 = arith.select %18, %13, %19 : vector<128x128xi1>, vector<128x128xf32>
    %c0_11 = arith.constant 0 : index
    %c0_12 = arith.constant 0 : index
    %21 = vector.load %arg8[%c0_11, %c0_12] : memref<128x1xf32, #tpu.memory_space<vmem>>, vector<128x1xf32>
    %cst_13 = arith.constant dense<0xFF800000> : vector<128xf32>
    %22 = vector.multi_reduction <maximumf>, %20, %cst_13 [1] : vector<128x128xf32> to vector<128xf32>
    %23 = vector.shape_cast %22 : vector<128xf32> to vector<128x1xf32>
    %24 = arith.maximumf %21, %23 : vector<128x1xf32>
    %25 = arith.subf %21, %24 : vector<128x1xf32>
    %26 = math.exp2 %25 : vector<128x1xf32>
    %27 = vector.broadcast %24 : vector<128x1xf32> to vector<128x128xf32>
    %28 = arith.subf %20, %27 : vector<128x128xf32>
    %29 = math.exp2 %28 : vector<128x128xf32>
    %c0_14 = arith.constant 0 : index
    %c0_15 = arith.constant 0 : index
    %30 = vector.load %arg9[%c0_14, %c0_15] : memref<128x1xf32, #tpu.memory_space<vmem>>, vector<128x1xf32>
    %31 = arith.mulf %26, %30 : vector<128x1xf32>
    %cst_16 = arith.constant dense<0.000000e+00> : vector<128xf32>
    %32 = vector.multi_reduction <add>, %29, %cst_16 [1] : vector<128x128xf32> to vector<128xf32>
    %33 = vector.shape_cast %32 : vector<128xf32> to vector<128x1xf32>
    %34 = arith.addf %31, %33 : vector<128x1xf32>
    %c0_17 = arith.constant 0 : index
    %c0_18 = arith.constant 0 : index
    %35 = vector.load %arg9[%c0_17, %c0_18] : memref<128x1xf32, #tpu.memory_space<vmem>>, vector<128x1xf32>
    tpu.vector_store %arg9[%c0_17, %c0_18], %34 {strides = array<i32>} : memref<128x1xf32, #tpu.memory_space<vmem>>, vector<128x1xf32>,
    %c0_19 = arith.constant 0 : index
    %c0_20 = arith.constant 0 : index
    %36 = vector.load %arg10[%c0_19, %c0_20] : memref<128x8xf32, #tpu.memory_space<vmem>>, vector<128x8xf32>
    %37 = vector.broadcast %26 : vector<128x1xf32> to vector<128x8xf32>
    %38 = arith.mulf %37, %36 : vector<128x8xf32>
    %cst_21 = arith.constant dense<0.000000e+00> : vector<128x8xf32>
    %39 = tpu.matmul %29, %12, %cst_21 {dimension_numbers = #tpu.dot_dimension_numbers<[1], [0], [0], [1], [0, 0, 1, 1], [], []>} : vector<128x128xf32>, vector<128x8xf32>, vector<128x8xf32> -> vector<128x8xf32>
    %40 = arith.addf %38, %39 : vector<128x8xf32>
    %c0_22 = arith.constant 0 : index
    %c0_23 = arith.constant 0 : index
    %41 = vector.load %arg10[%c0_22, %c0_23] : memref<128x8xf32, #tpu.memory_space<vmem>>, vector<128x8xf32>
    tpu.vector_store %arg10[%c0_22, %c0_23], %40 {strides = array<i32>} : memref<128x8xf32, #tpu.memory_space<vmem>>, vector<128x8xf32>,
    %c0_24 = arith.constant 0 : index
    %c0_25 = arith.constant 0 : index
    %42 = vector.load %arg8[%c0_24, %c0_25] : memref<128x1xf32, #tpu.memory_space<vmem>>, vector<128x1xf32>
    tpu.vector_store %arg8[%c0_24, %c0_25], %24 {strides = array<i32>} : memref<128x1xf32, #tpu.memory_space<vmem>>, vector<128x1xf32>,
    %c0_i32_26 = arith.constant 0 : i32
    %43 = arith.cmpi eq, %arg3, %c0_i32_26 : i32
    %44 = arith.extui %43 : i1 to i32
    %c0_i32_27 = arith.constant 0 : i32
    %45 = arith.cmpi ne, %44, %c0_i32_27 : i32
    scf.if %45 {
      %c0_28 = arith.constant 0 : index
      %c0_29 = arith.constant 0 : index
      %46 = vector.load %arg9[%c0_28, %c0_29] : memref<128x1xf32, #tpu.memory_space<vmem>>, vector<128x1xf32>
      %47 = tpu.reciprocal %46 {approx = true} : vector<128x1xf32> -> vector<128x1xf32>
      %c0_30 = arith.constant 0 : index
      %c0_31 = arith.constant 0 : index
      %48 = vector.load %arg10[%c0_30, %c0_31] : memref<128x8xf32, #tpu.memory_space<vmem>>, vector<128x8xf32>
      %49 = vector.broadcast %47 : vector<128x1xf32> to vector<128x8xf32>
      %50 = arith.mulf %48, %49 : vector<128x8xf32>
      %c0_32 = arith.constant 0 : index
      %c0_33 = arith.constant 0 : index
      %c0_34 = arith.constant 0 : index
      %c0_35 = arith.constant 0 : index
      %51 = vector.load %arg7[%c0_32, %c0_33, %c0_34, %c0_35] : memref<1x1x128x8xf32, #tpu.memory_space<vmem>>, vector<1x1x128x8xf32>
      %52 = vector.shape_cast %51 : vector<1x1x128x8xf32> to vector<128x8xf32>
      %53 = vector.shape_cast %50 : vector<128x8xf32> to vector<1x1x128x8xf32>
      tpu.vector_store %arg7[%c0_32, %c0_33, %c0_34, %c0_35], %53 {strides = array<i32>} : memref<1x1x128x8xf32, #tpu.memory_space<vmem>>, vector<1x1x128x8xf32>,
    } else {
    }
    return
  }
  func.func @transform_0(%arg0: i32, %arg1: i32, %arg2: i32, %arg3: i32) -> (i32, i32, i32, i32) {
    %c0_i32 = arith.constant 0 : i32
    %c0_i32_0 = arith.constant 0 : i32
    return %arg0, %arg1, %arg2, %c0_i32 : i32, i32, i32, i32
  }
  func.func @transform_1(%arg0: i32, %arg1: i32, %arg2: i32, %arg3: i32) -> (i32, i32, i32, i32) {
    %c0_i32 = arith.constant 0 : i32
    %c0_i32_0 = arith.constant 0 : i32
    %c0_i32_1 = arith.constant 0 : i32
    return %arg0, %arg1, %c0_i32, %c0_i32_0 : i32, i32, i32, i32
  }
  func.func @transform_2(%arg0: i32, %arg1: i32, %arg2: i32, %arg3: i32) -> (i32, i32, i32, i32) {
    %c0_i32 = arith.constant 0 : i32
    %c0_i32_0 = arith.constant 0 : i32
    %c0_i32_1 = arith.constant 0 : i32
    return %arg0, %arg1, %c0_i32, %c0_i32_0 : i32, i32, i32, i32
  }
  func.func @transform_3(%arg0: i32, %arg1: i32, %arg2: i32, %arg3: i32) -> (i32, i32, i32, i32) {
    %c0_i32 = arith.constant 0 : i32
    %c0_i32_0 = arith.constant 0 : i32
    return %arg0, %arg1, %arg2, %c0_i32 : i32, i32, i32, i32
  }
}

module attributes {stable_mosaic.version = 11 : i64} {
  func.func @_qkv_proj_kernel(%arg0: i32, %arg1: i32, %arg2: i32, %arg3: memref<1x128x32xf32, #tpu.memory_space<vmem>>, %arg4: memref<1x32x96xf32, #tpu.memory_space<vmem>>, %arg5: memref<1x1x96xf32, #tpu.memory_space<vmem>>, %arg6: memref<1x4x128x8xf32, #tpu.memory_space<vmem>>, %arg7: memref<1x4x128x8xf32, #tpu.memory_space<vmem>>, %arg8: memref<1x4x128x8xf32, #tpu.memory_space<vmem>>) attributes {dimension_semantics = [#tpu.dimension_semantics<parallel>, #tpu.dimension_semantics<parallel>, #tpu.dimension_semantics<parallel>], iteration_bounds = array<i64: 2, 1, 1>, scalar_prefetch = 0 : i64, scratch_operands = 0 : i64, tpu.core_type = #tpu.core_type<tc>, window_params = [{transform_indices = @transform_0, window_bounds = array<i64: 1, 128, 32>}, {transform_indices = @transform_1, window_bounds = array<i64: 1, 32, 96>}, {transform_indices = @transform_2, window_bounds = array<i64: 1, 1, 96>}, {transform_indices = @transform_3, window_bounds = array<i64: 1, 4, 128, 8>}, {transform_indices = @transform_4, window_bounds = array<i64: 1, 4, 128, 8>}, {transform_indices = @transform_5, window_bounds = array<i64: 1, 4, 128, 8>}]} {
    %c0 = arith.constant 0 : index
    %c0_0 = arith.constant 0 : index
    %c0_1 = arith.constant 0 : index
    %0 = vector.load %arg3[%c0, %c0_0, %c0_1] : memref<1x128x32xf32, #tpu.memory_space<vmem>>, vector<1x128x32xf32>
    %1 = vector.shape_cast %0 : vector<1x128x32xf32> to vector<128x32xf32>
    %c0_2 = arith.constant 0 : index
    %c0_3 = arith.constant 0 : index
    %c0_4 = arith.constant 0 : index
    %2 = vector.load %arg4[%c0_2, %c0_3, %c0_4] : memref<1x32x96xf32, #tpu.memory_space<vmem>>, vector<1x32x96xf32>
    %3 = vector.shape_cast %2 : vector<1x32x96xf32> to vector<32x96xf32>
    %cst = arith.constant dense<0.000000e+00> : vector<128x96xf32>
    %4 = tpu.matmul %1, %3, %cst {dimension_numbers = #tpu.dot_dimension_numbers<[1], [0], [0], [1], [0, 0, 1, 1], [], []>} : vector<128x32xf32>, vector<32x96xf32>, vector<128x96xf32> -> vector<128x96xf32>
    %c0_5 = arith.constant 0 : index
    %c0_6 = arith.constant 0 : index
    %c0_7 = arith.constant 0 : index
    %5 = vector.load %arg5[%c0_5, %c0_6, %c0_7] : memref<1x1x96xf32, #tpu.memory_space<vmem>>, vector<1x1x96xf32>
    %6 = vector.shape_cast %5 : vector<1x1x96xf32> to vector<1x96xf32>
    %7 = vector.broadcast %6 : vector<1x96xf32> to vector<128x96xf32>
    %8 = arith.addf %4, %7 : vector<128x96xf32>
    %9 = vector.extract_strided_slice %8 {offsets = [0, 0], sizes = [128, 8], strides = [1, 1]} : vector<128x96xf32> to vector<128x8xf32>
    %c0_8 = arith.constant 0 : index
    %c0_9 = arith.constant 0 : index
    %c0_10 = arith.constant 0 : index
    %c0_11 = arith.constant 0 : index
    %10 = vector.load %arg6[%c0_8, %c0_9, %c0_10, %c0_11] : memref<1x4x128x8xf32, #tpu.memory_space<vmem>>, vector<1x1x128x8xf32>
    %11 = vector.shape_cast %10 : vector<1x1x128x8xf32> to vector<128x8xf32>
    %12 = vector.shape_cast %9 : vector<128x8xf32> to vector<1x1x128x8xf32>
    tpu.vector_store %arg6[%c0_8, %c0_9, %c0_10, %c0_11], %12 {strides = array<i32>} : memref<1x4x128x8xf32, #tpu.memory_space<vmem>>, vector<1x1x128x8xf32>,
    %13 = vector.extract_strided_slice %8 {offsets = [0, 32], sizes = [128, 8], strides = [1, 1]} : vector<128x96xf32> to vector<128x8xf32>
    %c0_12 = arith.constant 0 : index
    %c0_13 = arith.constant 0 : index
    %c0_14 = arith.constant 0 : index
    %c0_15 = arith.constant 0 : index
    %14 = vector.load %arg7[%c0_12, %c0_13, %c0_14, %c0_15] : memref<1x4x128x8xf32, #tpu.memory_space<vmem>>, vector<1x1x128x8xf32>
    %15 = vector.shape_cast %14 : vector<1x1x128x8xf32> to vector<128x8xf32>
    %16 = vector.shape_cast %13 : vector<128x8xf32> to vector<1x1x128x8xf32>
    tpu.vector_store %arg7[%c0_12, %c0_13, %c0_14, %c0_15], %16 {strides = array<i32>} : memref<1x4x128x8xf32, #tpu.memory_space<vmem>>, vector<1x1x128x8xf32>,
    %17 = vector.extract_strided_slice %8 {offsets = [0, 64], sizes = [128, 8], strides = [1, 1]} : vector<128x96xf32> to vector<128x8xf32>
    %c0_16 = arith.constant 0 : index
    %c0_17 = arith.constant 0 : index
    %c0_18 = arith.constant 0 : index
    %c0_19 = arith.constant 0 : index
    %18 = vector.load %arg8[%c0_16, %c0_17, %c0_18, %c0_19] : memref<1x4x128x8xf32, #tpu.memory_space<vmem>>, vector<1x1x128x8xf32>
    %19 = vector.shape_cast %18 : vector<1x1x128x8xf32> to vector<128x8xf32>
    %20 = vector.shape_cast %17 : vector<128x8xf32> to vector<1x1x128x8xf32>
    tpu.vector_store %arg8[%c0_16, %c0_17, %c0_18, %c0_19], %20 {strides = array<i32>} : memref<1x4x128x8xf32, #tpu.memory_space<vmem>>, vector<1x1x128x8xf32>,
    %21 = vector.extract_strided_slice %8 {offsets = [0, 8], sizes = [128, 8], strides = [1, 1]} : vector<128x96xf32> to vector<128x8xf32>
    %c0_20 = arith.constant 0 : index
    %c1 = arith.constant 1 : index
    %c0_21 = arith.constant 0 : index
    %c0_22 = arith.constant 0 : index
    %22 = vector.load %arg6[%c0_20, %c1, %c0_21, %c0_22] : memref<1x4x128x8xf32, #tpu.memory_space<vmem>>, vector<1x1x128x8xf32>
    %23 = vector.shape_cast %22 : vector<1x1x128x8xf32> to vector<128x8xf32>
    %24 = vector.shape_cast %21 : vector<128x8xf32> to vector<1x1x128x8xf32>
    tpu.vector_store %arg6[%c0_20, %c1, %c0_21, %c0_22], %24 {strides = array<i32>} : memref<1x4x128x8xf32, #tpu.memory_space<vmem>>, vector<1x1x128x8xf32>,
    %25 = vector.extract_strided_slice %8 {offsets = [0, 40], sizes = [128, 8], strides = [1, 1]} : vector<128x96xf32> to vector<128x8xf32>
    %c0_23 = arith.constant 0 : index
    %c1_24 = arith.constant 1 : index
    %c0_25 = arith.constant 0 : index
    %c0_26 = arith.constant 0 : index
    %26 = vector.load %arg7[%c0_23, %c1_24, %c0_25, %c0_26] : memref<1x4x128x8xf32, #tpu.memory_space<vmem>>, vector<1x1x128x8xf32>
    %27 = vector.shape_cast %26 : vector<1x1x128x8xf32> to vector<128x8xf32>
    %28 = vector.shape_cast %25 : vector<128x8xf32> to vector<1x1x128x8xf32>
    tpu.vector_store %arg7[%c0_23, %c1_24, %c0_25, %c0_26], %28 {strides = array<i32>} : memref<1x4x128x8xf32, #tpu.memory_space<vmem>>, vector<1x1x128x8xf32>,
    %29 = vector.extract_strided_slice %8 {offsets = [0, 72], sizes = [128, 8], strides = [1, 1]} : vector<128x96xf32> to vector<128x8xf32>
    %c0_27 = arith.constant 0 : index
    %c1_28 = arith.constant 1 : index
    %c0_29 = arith.constant 0 : index
    %c0_30 = arith.constant 0 : index
    %30 = vector.load %arg8[%c0_27, %c1_28, %c0_29, %c0_30] : memref<1x4x128x8xf32, #tpu.memory_space<vmem>>, vector<1x1x128x8xf32>
    %31 = vector.shape_cast %30 : vector<1x1x128x8xf32> to vector<128x8xf32>
    %32 = vector.shape_cast %29 : vector<128x8xf32> to vector<1x1x128x8xf32>
    tpu.vector_store %arg8[%c0_27, %c1_28, %c0_29, %c0_30], %32 {strides = array<i32>} : memref<1x4x128x8xf32, #tpu.memory_space<vmem>>, vector<1x1x128x8xf32>,
    %33 = vector.extract_strided_slice %8 {offsets = [0, 16], sizes = [128, 8], strides = [1, 1]} : vector<128x96xf32> to vector<128x8xf32>
    %c0_31 = arith.constant 0 : index
    %c2 = arith.constant 2 : index
    %c0_32 = arith.constant 0 : index
    %c0_33 = arith.constant 0 : index
    %34 = vector.load %arg6[%c0_31, %c2, %c0_32, %c0_33] : memref<1x4x128x8xf32, #tpu.memory_space<vmem>>, vector<1x1x128x8xf32>
    %35 = vector.shape_cast %34 : vector<1x1x128x8xf32> to vector<128x8xf32>
    %36 = vector.shape_cast %33 : vector<128x8xf32> to vector<1x1x128x8xf32>
    tpu.vector_store %arg6[%c0_31, %c2, %c0_32, %c0_33], %36 {strides = array<i32>} : memref<1x4x128x8xf32, #tpu.memory_space<vmem>>, vector<1x1x128x8xf32>,
    %37 = vector.extract_strided_slice %8 {offsets = [0, 48], sizes = [128, 8], strides = [1, 1]} : vector<128x96xf32> to vector<128x8xf32>
    %c0_34 = arith.constant 0 : index
    %c2_35 = arith.constant 2 : index
    %c0_36 = arith.constant 0 : index
    %c0_37 = arith.constant 0 : index
    %38 = vector.load %arg7[%c0_34, %c2_35, %c0_36, %c0_37] : memref<1x4x128x8xf32, #tpu.memory_space<vmem>>, vector<1x1x128x8xf32>
    %39 = vector.shape_cast %38 : vector<1x1x128x8xf32> to vector<128x8xf32>
    %40 = vector.shape_cast %37 : vector<128x8xf32> to vector<1x1x128x8xf32>
    tpu.vector_store %arg7[%c0_34, %c2_35, %c0_36, %c0_37], %40 {strides = array<i32>} : memref<1x4x128x8xf32, #tpu.memory_space<vmem>>, vector<1x1x128x8xf32>,
    %41 = vector.extract_strided_slice %8 {offsets = [0, 80], sizes = [128, 8], strides = [1, 1]} : vector<128x96xf32> to vector<128x8xf32>
    %c0_38 = arith.constant 0 : index
    %c2_39 = arith.constant 2 : index
    %c0_40 = arith.constant 0 : index
    %c0_41 = arith.constant 0 : index
    %42 = vector.load %arg8[%c0_38, %c2_39, %c0_40, %c0_41] : memref<1x4x128x8xf32, #tpu.memory_space<vmem>>, vector<1x1x128x8xf32>
    %43 = vector.shape_cast %42 : vector<1x1x128x8xf32> to vector<128x8xf32>
    %44 = vector.shape_cast %41 : vector<128x8xf32> to vector<1x1x128x8xf32>
    tpu.vector_store %arg8[%c0_38, %c2_39, %c0_40, %c0_41], %44 {strides = array<i32>} : memref<1x4x128x8xf32, #tpu.memory_space<vmem>>, vector<1x1x128x8xf32>,
    %45 = vector.extract_strided_slice %8 {offsets = [0, 24], sizes = [128, 8], strides = [1, 1]} : vector<128x96xf32> to vector<128x8xf32>
    %c0_42 = arith.constant 0 : index
    %c3 = arith.constant 3 : index
    %c0_43 = arith.constant 0 : index
    %c0_44 = arith.constant 0 : index
    %46 = vector.load %arg6[%c0_42, %c3, %c0_43, %c0_44] : memref<1x4x128x8xf32, #tpu.memory_space<vmem>>, vector<1x1x128x8xf32>
    %47 = vector.shape_cast %46 : vector<1x1x128x8xf32> to vector<128x8xf32>
    %48 = vector.shape_cast %45 : vector<128x8xf32> to vector<1x1x128x8xf32>
    tpu.vector_store %arg6[%c0_42, %c3, %c0_43, %c0_44], %48 {strides = array<i32>} : memref<1x4x128x8xf32, #tpu.memory_space<vmem>>, vector<1x1x128x8xf32>,
    %49 = vector.extract_strided_slice %8 {offsets = [0, 56], sizes = [128, 8], strides = [1, 1]} : vector<128x96xf32> to vector<128x8xf32>
    %c0_45 = arith.constant 0 : index
    %c3_46 = arith.constant 3 : index
    %c0_47 = arith.constant 0 : index
    %c0_48 = arith.constant 0 : index
    %50 = vector.load %arg7[%c0_45, %c3_46, %c0_47, %c0_48] : memref<1x4x128x8xf32, #tpu.memory_space<vmem>>, vector<1x1x128x8xf32>
    %51 = vector.shape_cast %50 : vector<1x1x128x8xf32> to vector<128x8xf32>
    %52 = vector.shape_cast %49 : vector<128x8xf32> to vector<1x1x128x8xf32>
    tpu.vector_store %arg7[%c0_45, %c3_46, %c0_47, %c0_48], %52 {strides = array<i32>} : memref<1x4x128x8xf32, #tpu.memory_space<vmem>>, vector<1x1x128x8xf32>,
    %53 = vector.extract_strided_slice %8 {offsets = [0, 88], sizes = [128, 8], strides = [1, 1]} : vector<128x96xf32> to vector<128x8xf32>
    %c0_49 = arith.constant 0 : index
    %c3_50 = arith.constant 3 : index
    %c0_51 = arith.constant 0 : index
    %c0_52 = arith.constant 0 : index
    %54 = vector.load %arg8[%c0_49, %c3_50, %c0_51, %c0_52] : memref<1x4x128x8xf32, #tpu.memory_space<vmem>>, vector<1x1x128x8xf32>
    %55 = vector.shape_cast %54 : vector<1x1x128x8xf32> to vector<128x8xf32>
    %56 = vector.shape_cast %53 : vector<128x8xf32> to vector<1x1x128x8xf32>
    tpu.vector_store %arg8[%c0_49, %c3_50, %c0_51, %c0_52], %56 {strides = array<i32>} : memref<1x4x128x8xf32, #tpu.memory_space<vmem>>, vector<1x1x128x8xf32>,
    return
  }
  func.func @transform_0(%arg0: i32, %arg1: i32, %arg2: i32) -> (i32, i32, i32) {
    %c0_i32 = arith.constant 0 : i32
    %c0_i32_0 = arith.constant 0 : i32
    return %arg0, %arg1, %c0_i32 : i32, i32, i32
  }
  func.func @transform_1(%arg0: i32, %arg1: i32, %arg2: i32) -> (i32, i32, i32) {
    %c0_i32 = arith.constant 0 : i32
    %c0_i32_0 = arith.constant 0 : i32
    %c0_i32_1 = arith.constant 0 : i32
    return %arg2, %c0_i32, %c0_i32_0 : i32, i32, i32
  }
  func.func @transform_2(%arg0: i32, %arg1: i32, %arg2: i32) -> (i32, i32, i32) {
    %c0_i32 = arith.constant 0 : i32
    %c0_i32_0 = arith.constant 0 : i32
    %c0_i32_1 = arith.constant 0 : i32
    return %arg2, %c0_i32, %c0_i32_0 : i32, i32, i32
  }
  func.func @transform_3(%arg0: i32, %arg1: i32, %arg2: i32) -> (i32, i32, i32, i32) {
    %c0_i32 = arith.constant 0 : i32
    %c0_i32_0 = arith.constant 0 : i32
    return %arg0, %arg2, %arg1, %c0_i32 : i32, i32, i32, i32
  }
  func.func @transform_4(%arg0: i32, %arg1: i32, %arg2: i32) -> (i32, i32, i32, i32) {
    %c0_i32 = arith.constant 0 : i32
    %c0_i32_0 = arith.constant 0 : i32
    return %arg0, %arg2, %arg1, %c0_i32 : i32, i32, i32, i32
  }
  func.func @transform_5(%arg0: i32, %arg1: i32, %arg2: i32) -> (i32, i32, i32, i32) {
    %c0_i32 = arith.constant 0 : i32
    %c0_i32_0 = arith.constant 0 : i32
    return %arg0, %arg2, %arg1, %c0_i32 : i32, i32, i32, i32
  }
}

</mosaic_0001>

<llo_original>
// kernel: multi_head_self_attention.2
$region0: #{multi_head_self_attention.2}
  #allocation0 [shape = 'u32[]', space=smem, size = 0x4, offset = 0x4, fixed_abs, tag = 'smem constant byte address 0x4 - core index']
  #allocation1 [shape = 'u32[72,128]{1,0:T(1,128)}', space=vmem, size = 0x9000, scoped, tag = 'internal scratch']
  %s0 = inlined_call_operand.vmem [shape: f32[2,128,32], index: 0, kind: input, shape index: {}]
  %s1 = inlined_call_operand.vmem [shape: f32[1,32,96], index: 1, kind: input, shape index: {}]
  %s2 = inlined_call_operand.vmem [shape: f32[1,1,96], index: 2, kind: input, shape index: {}]
  %s3 = inlined_call_operand.vmem [shape: f32[2,4,128,8], index: 3, kind: output, shape index: {0}]
  %s4 = inlined_call_operand.vmem [shape: f32[2,4,128,8], index: 4, kind: output, shape index: {1}]
  %s5 = inlined_call_operand.vmem [shape: f32[2,4,128,8], index: 5, kind: output, shape index: {2}]
  %6 = xla_tuple %s3, %s4, %s5
  %s7 = sld [smem:[#allocation0]]
  $region61: #{multi_head_self_attention.2} parent=0
    _
  %s9 = ssub.s32 1, %s7
  %s10 = scalar_select 0, %s9, %s7
  loop: start=0, step=1, limit=4
  $region2: #{multi_head_self_attention.2} parent=0 // loop_pre_header
    _
  $region3: #{multi_head_self_attention.2} parent=0 // loop_header
    %s12 = sphi 0, %s16
    %p13 = scmp.ge.s32.totalorder %s12, 4
    %s19 = sphi 0, %s38
    %s20 = sphi 0, %s34
    %s21 = sphi 0, %s30
    %s22 = sphi 0, %s19
    %s23 = sphi 0, %s20
    %s24 = sphi 0, %s21
    %s25 = sphi 0, %s22
    %s26 = sphi 0, %s23
    %s27 = sphi 0, %s24
    %s43 = sphi 0, %s45
    %s46 = sphi 0, %s43
    %s47 = sphi 0, %s46
    %s63 = sphi 0, %s47
    %s69 = sphi 0, %s71
    %s72 = sphi 0, %s69
    %s73 = sphi 0, %s72
    %s89 = sphi 0, %s73
    %s95 = sphi 0, %s97
    %s98 = sphi 0, %s95
    %s99 = sphi 0, %s98
    %s115 = sphi 0, %s99
    %s125 = sphi 0, %s127
    %s128 = sphi 0, %s125
    %s129 = sphi 0, %s128
    %s145 = sphi 0, %s129
    %s155 = sphi 0, %s157
    %s158 = sphi 0, %s155
    %s159 = sphi 0, %s158
    %s175 = sphi 0, %s159
    %s185 = sphi 0, %s187
    %s188 = sphi 0, %s185
    %s189 = sphi 0, %s188
    %s205 = sphi 0, %s189
  $region4: #{multi_head_self_attention.2} parent=0 // loop_header_branch
    %15 = sbr.rel (%p13) target = $region8
  $region5: #{multi_head_self_attention.2} parent=0 // loop_body
    %s17 = ssub.s32 %s12, 1
    %s18 = ssub.s32 %s12, 2
    %s28 = sadd.s32 1, %s21
    %p29 = scmp.ge.s32.totalorder %s28, 1
    %s30 = scalar_select %p29, 0, %s28
    %s31 = sadd.s32 1, %s20
    %s32 = scalar_select %p29, %s31, %s20
    %p33 = scmp.ge.s32.totalorder %s32, 1
    %s34 = scalar_select %p33, 0, %s32
    %s35 = sadd.s32 1, %s19
    %s36 = scalar_select %p33, %s35, %s19
    %p37 = scmp.ge.s32.totalorder %s36, 2
    %s38 = scalar_select %p37, 0, %s36
    %s39 = ssub.s32 %s19, %s38
    %s40 = ssub.s32 %s20, %s34
    %s41 = sor.u32 %s39, %s40
    %p42 = scmp.eq.s32.totalorder %s41, 0
    %s44 = sadd.s32 %s43, 1
    %s45 = scalar_select %p42, %s43, %s44
    %p48 = pneg %p42
    %p49 = scmp.eq.s32.totalorder %s12, 1
    %p50 = por %p48, %p49
    %p51 = scmp.ne.s32.totalorder %s43, %s46
    %p52 = scmp.eq.s32.totalorder %s12, 0
    %p53 = por %p51, %p52
    %p54 = scmp.ne.s32.totalorder %s43, %s46
    %p55 = scmp.eq.s32.totalorder %s17, 1
    %p56 = por %p54, %p55
    %p57 = scmp.ne.s32.totalorder %s46, %s47
    %p58 = scmp.eq.s32.totalorder %s17, 0
    %p59 = por %p57, %p58
    %p60 = scmp.ne.s32.totalorder %s46, %s47
    %p61 = scmp.eq.s32.totalorder %s18, 1
    %p62 = por %p60, %p61
    %p64 = scmp.ne.s32.totalorder %s47, %s63
    %p65 = scmp.eq.s32.totalorder %s18, 0
    %p66 = por %p64, %p65
    %s67 = ssub.s32 %s21, %s30
    %p68 = scmp.eq.s32.totalorder %s67, 0
    %s70 = sadd.s32 %s69, 1
    %s71 = scalar_select %p68, %s69, %s70
    %p74 = pneg %p68
    %p75 = scmp.eq.s32.totalorder %s12, 1
    %p76 = por %p74, %p75
    %p77 = scmp.ne.s32.totalorder %s69, %s72
    %p78 = scmp.eq.s32.totalorder %s12, 0
    %p79 = por %p77, %p78
    %p80 = scmp.ne.s32.totalorder %s69, %s72
    %p81 = scmp.eq.s32.totalorder %s17, 1
    %p82 = por %p80, %p81
    %p83 = scmp.ne.s32.totalorder %s72, %s73
    %p84 = scmp.eq.s32.totalorder %s17, 0
    %p85 = por %p83, %p84
    %p86 = scmp.ne.s32.totalorder %s72, %s73
    %p87 = scmp.eq.s32.totalorder %s18, 1
    %p88 = por %p86, %p87
    %p90 = scmp.ne.s32.totalorder %s73, %s89
    %p91 = scmp.eq.s32.totalorder %s18, 0
    %p92 = por %p90, %p91
    %s93 = ssub.s32 %s21, %s30
    %p94 = scmp.eq.s32.totalorder %s93, 0
    %s96 = sadd.s32 %s95, 1
    %s97 = scalar_select %p94, %s95, %s96
    %p100 = pneg %p94
    %p101 = scmp.eq.s32.totalorder %s12, 1
    %p102 = por %p100, %p101
    %p103 = scmp.ne.s32.totalorder %s95, %s98
    %p104 = scmp.eq.s32.totalorder %s12, 0
    %p105 = por %p103, %p104
    %p106 = scmp.ne.s32.totalorder %s95, %s98
    %p107 = scmp.eq.s32.totalorder %s17, 1
    %p108 = por %p106, %p107
    %p109 = scmp.ne.s32.totalorder %s98, %s99
    %p110 = scmp.eq.s32.totalorder %s17, 0
    %p111 = por %p109, %p110
    %p112 = scmp.ne.s32.totalorder %s98, %s99
    %p113 = scmp.eq.s32.totalorder %s18, 1
    %p114 = por %p112, %p113
    %p116 = scmp.ne.s32.totalorder %s99, %s115
    %p117 = scmp.eq.s32.totalorder %s18, 0
    %p118 = por %p116, %p117
    %s119 = ssub.s32 %s19, %s38
    %s120 = ssub.s32 %s21, %s30
    %s121 = sor.u32 %s119, %s120
    %s122 = ssub.s32 %s20, %s34
    %s123 = sor.u32 %s121, %s122
    %p124 = scmp.eq.s32.totalorder %s123, 0
    %s126 = sadd.s32 %s125, 1
    %s127 = scalar_select %p124, %s125, %s126
    %p130 = pneg %p124
    %p131 = scmp.eq.s32.totalorder %s12, 1
    %p132 = por %p130, %p131
    %p133 = scmp.ne.s32.totalorder %s125, %s128
    %p134 = scmp.eq.s32.totalorder %s12, 0
    %p135 = por %p133, %p134
    %p136 = scmp.ne.s32.totalorder %s125, %s128
    %p137 = scmp.eq.s32.totalorder %s17, 1
    %p138 = por %p136, %p137
    %p139 = scmp.ne.s32.totalorder %s128, %s129
    %p140 = scmp.eq.s32.totalorder %s17, 0
    %p141 = por %p139, %p140
    %p142 = scmp.ne.s32.totalorder %s128, %s129
    %p143 = scmp.eq.s32.totalorder %s18, 1
    %p144 = por %p142, %p143
    %p146 = scmp.ne.s32.totalorder %s129, %s145
    %p147 = scmp.eq.s32.totalorder %s18, 0
    %p148 = por %p146, %p147
    %s149 = ssub.s32 %s19, %s38
    %s150 = ssub.s32 %s21, %s30
    %s151 = sor.u32 %s149, %s150
    %s152 = ssub.s32 %s20, %s34
    %s153 = sor.u32 %s151, %s152
    %p154 = scmp.eq.s32.totalorder %s153, 0
    %s156 = sadd.s32 %s155, 1
    %s157 = scalar_select %p154, %s155, %s156
    %p160 = pneg %p154
    %p161 = scmp.eq.s32.totalorder %s12, 1
    %p162 = por %p160, %p161
    %p163 = scmp.ne.s32.totalorder %s155, %s158
    %p164 = scmp.eq.s32.totalorder %s12, 0
    %p165 = por %p163, %p164
    %p166 = scmp.ne.s32.totalorder %s155, %s158
    %p167 = scmp.eq.s32.totalorder %s17, 1
    %p168 = por %p166, %p167
    %p169 = scmp.ne.s32.totalorder %s158, %s159
    %p170 = scmp.eq.s32.totalorder %s17, 0
    %p171 = por %p169, %p170
    %p172 = scmp.ne.s32.totalorder %s158, %s159
    %p173 = scmp.eq.s32.totalorder %s18, 1
    %p174 = por %p172, %p173
    %p176 = scmp.ne.s32.totalorder %s159, %s175
    %p177 = scmp.eq.s32.totalorder %s18, 0
    %p178 = por %p176, %p177
    %s179 = ssub.s32 %s19, %s38
    %s180 = ssub.s32 %s21, %s30
    %s181 = sor.u32 %s179, %s180
    %s182 = ssub.s32 %s20, %s34
    %s183 = sor.u32 %s181, %s182
    %p184 = scmp.eq.s32.totalorder %s183, 0
    %s186 = sadd.s32 %s185, 1
    %s187 = scalar_select %p184, %s185, %s186
    %p190 = pneg %p184
    %p191 = scmp.eq.s32.totalorder %s12, 1
    %p192 = por %p190, %p191
    %p193 = scmp.ne.s32.totalorder %s185, %s188
    %p194 = scmp.eq.s32.totalorder %s12, 0
    %p195 = por %p193, %p194
    %p196 = scmp.ne.s32.totalorder %s185, %s188
    %p197 = scmp.eq.s32.totalorder %s17, 1
    %p198 = por %p196, %p197
    %p199 = scmp.ne.s32.totalorder %s188, %s189
    %p200 = scmp.eq.s32.totalorder %s17, 0
    %p201 = por %p199, %p200
    %p202 = scmp.ne.s32.totalorder %s188, %s189
    %p203 = scmp.eq.s32.totalorder %s18, 1
    %p204 = por %p202, %p203
    %p206 = scmp.ne.s32.totalorder %s189, %s205
    %p207 = scmp.eq.s32.totalorder %s18, 0
    %p208 = por %p206, %p207
    %p209 = scmp.le.s32.totalorder 1, %s12
    %p210 = scmp.lt.s32.totalorder %s12, 3
    %p211 = pnand %p209, %p210
    %p212 = pneg %p211
    // Predicated region
    $region9: #{multi_head_self_attention.2} parent=5 // pred_check
      _
    $region10: #{multi_head_self_attention.2} parent=5 // pred_check_branch
      %214 = sbr.rel (%p211) target = $region12
    $region11: #{multi_head_self_attention.2} parent=5 // pred_region
      %s215 = ssub.s32 %s12, 1
      // Predicated region
      $region13: #{multi_head_self_attention.2} parent=11 // pred_check
        %p216 = pneg %p85
      $region14: #{multi_head_self_attention.2} parent=11 // pred_check_branch
        %218 = sbr.rel (%p216) target = $region16
      $region15: #{multi_head_self_attention.2} parent=11 // pred_region
        %p219 = scmp.lt.s32.totalorder %s24, 0
        %s220 = scalar_select %p219, %s24, 0
        %s221 = smul.addr %s220, 4
        %s222 = smul.addr %s221, 8
        %s223 = scalar_lea.vmem %s1, %s222
      $region16: #{multi_head_self_attention.2} parent=11 // pred_fallthru
        _
      // Predicated region
      $region17: #{multi_head_self_attention.2} parent=11 // pred_check
        %p224 = pneg %p111
      $region18: #{multi_head_self_attention.2} parent=11 // pred_check_branch
        %226 = sbr.rel (%p224) target = $region20
      $region19: #{multi_head_self_attention.2} parent=11 // pred_region
        %p227 = scmp.lt.s32.totalorder %s24, 0
        %s228 = scalar_select %p227, %s24, 0
        %s229 = scalar_lea.vmem %s2, %s228
      $region20: #{multi_head_self_attention.2} parent=11 // pred_fallthru
        _
    $region12: #{multi_head_self_attention.2} parent=5 // pred_fallthru
      _
    %p230 = scmp.lt.s32.totalorder %s12, 2
    // Predicated region
    $region21: #{multi_head_self_attention.2} parent=5 // pred_check
      %p231 = pneg %p230
    $region22: #{multi_head_self_attention.2} parent=5 // pred_check_branch
      %233 = sbr.rel (%p231) target = $region24
    $region23: #{multi_head_self_attention.2} parent=5 // pred_region
      // Predicated region
      $region25: #{multi_head_self_attention.2} parent=23 // pred_check
        %p234 = pneg %p53
      $region26: #{multi_head_self_attention.2} parent=23 // pred_check_branch
        %236 = sbr.rel (%p234) target = $region28
      $region27: #{multi_head_self_attention.2} parent=23 // pred_region
        %s237 = smul.u32 16, %s20
        %p238 = scmp.lt.s32.totalorder %s19, 1
        %s239 = scalar_select %p238, %s19, 1
        %p240 = scmp.lt.s32.totalorder %s237, 15
        %s241 = scalar_select %p240, %s237, 15
        %s242 = smul.addr %s239, 16
        %s243 = sadd.s32 %s241, %s242
        %s244 = smul.addr %s243, 8
        %s245 = scalar_lea.vmem %s0, %s244
        %s246 = smul.u32 16, %s20
      $region28: #{multi_head_self_attention.2} parent=23 // pred_fallthru
        _
    $region24: #{multi_head_self_attention.2} parent=5 // pred_fallthru
      _
    %p247 = scmp.le.s32.totalorder 1, %s12
    %p248 = scmp.lt.s32.totalorder %s12, 3
    %p249 = pnand %p247, %p248
    %p250 = pneg %p249
    // Predicated region
    $region29: #{multi_head_self_attention.2} parent=5 // pred_check
      _
    $region30: #{multi_head_self_attention.2} parent=5 // pred_check_branch
      %252 = sbr.rel (%p249) target = $region32
    $region31: #{multi_head_self_attention.2} parent=5 // pred_region
      %s253 = ssub.s32 %s12, 1
      %s254 = smul.u32 16, %s23
      %p255 = scmp.lt.s32.totalorder %s22, 1
      %s256 = scalar_select %p255, %s22, 1
      %p257 = scmp.lt.s32.totalorder %s254, 15
      %s258 = scalar_select %p257, %s254, 15
      %s259 = smul.addr %s256, 16
      %s260 = sadd.s32 %s258, %s259
      %s261 = smul.addr %s260, 8
      %s262 = scalar_lea.vmem %s0, %s261
      %p263 = pneg %p59
      %p264 = pneg %p56
      %p265 = scmp.lt.s32.totalorder %s24, 0
      %s266 = scalar_select %p265, %s24, 0
      %s267 = smul.addr %s266, 4
      %s268 = smul.addr %s267, 8
      %s269 = scalar_lea.vmem %s1, %s268
      %p270 = pneg %p85
      %p271 = pneg %p82
      %p272 = scmp.lt.s32.totalorder %s24, 0
      %s273 = scalar_select %p272, %s24, 0
      %s274 = scalar_lea.vmem %s2, %s273
      %p275 = pneg %p111
      %p276 = pneg %p108
      %p277 = pneg %p141
      %p278 = pneg %p138
      %s279 = smul.u32 4, %s24
      %s280 = smul.u32 16, %s23
      %p281 = scmp.lt.s32.totalorder %s22, 1
      %s282 = scalar_select %p281, %s22, 1
      %p283 = scmp.lt.s32.totalorder %s279, 3
      %s284 = scalar_select %p283, %s279, 3
      %p285 = scmp.lt.s32.totalorder %s280, 15
      %s286 = scalar_select %p285, %s280, 15
      %s287 = smul.addr %s284, 16
      %s288 = sadd.s32 %s286, %s287
      %s289 = smul.addr %s282, 64
      %s290 = sadd.s32 %s288, %s289
      %s291 = smul.addr %s290, 8
      %s292 = scalar_lea.vmem %s3, %s291
      %p293 = pneg %p171
      %p294 = pneg %p168
      %s295 = smul.u32 4, %s24
      %s296 = smul.u32 16, %s23
      %p297 = scmp.lt.s32.totalorder %s22, 1
      %s298 = scalar_select %p297, %s22, 1
      %p299 = scmp.lt.s32.totalorder %s295, 3
      %s300 = scalar_select %p299, %s295, 3
      %p301 = scmp.lt.s32.totalorder %s296, 15
      %s302 = scalar_select %p301, %s296, 15
      %s303 = smul.addr %s300, 16
      %s304 = sadd.s32 %s302, %s303
      %s305 = smul.addr %s298, 64
      %s306 = sadd.s32 %s304, %s305
      %s307 = smul.addr %s306, 8
      %s308 = scalar_lea.vmem %s4, %s307
      %p309 = pneg %p201
      %p310 = pneg %p198
      %s311 = smul.u32 4, %s24
      %s312 = smul.u32 16, %s23
      %p313 = scmp.lt.s32.totalorder %s22, 1
      %s314 = scalar_select %p313, %s22, 1
      %p315 = scmp.lt.s32.totalorder %s311, 3
      %s316 = scalar_select %p315, %s311, 3
      %p317 = scmp.lt.s32.totalorder %s312, 15
      %s318 = scalar_select %p317, %s312, 15
      %s319 = smul.addr %s316, 16
      %s320 = sadd.s32 %s318, %s319
      %s321 = smul.addr %s314, 64
      %s322 = sadd.s32 %s320, %s321
      %s323 = smul.addr %s322, 8
      %s324 = scalar_lea.vmem %s5, %s323
      %s325 = smul.u32 16, %s23
      %p326 = scmp.lt.s32.totalorder %s22, 1
      %s327 = scalar_select %p326, %s22, 1
      %p328 = scmp.lt.s32.totalorder %s325, 15
      %s329 = scalar_select %p328, %s325, 15
      %s330 = smul.addr %s327, 16
      %s331 = sadd.s32 %s329, %s330
      %s332 = smul.addr %s331, 8
      %s333 = scalar_lea.vmem %s0, %s332
      %s334 = smul.u32 16, %s23
      %p335 = scmp.lt.s32.totalorder %s24, 0
      %s336 = scalar_select %p335, %s24, 0
      %s337 = smul.addr %s336, 4
      %s338 = smul.addr %s337, 8
      %s339 = scalar_lea.vmem %s1, %s338
      %p340 = scmp.lt.s32.totalorder %s24, 0
      %s341 = scalar_select %p340, %s24, 0
      %s342 = scalar_lea.vmem %s2, %s341
      %s343 = smul.u32 4, %s24
      %s344 = smul.u32 16, %s23
      %p345 = scmp.lt.s32.totalorder %s22, 1
      %s346 = scalar_select %p345, %s22, 1
      %p347 = scmp.lt.s32.totalorder %s343, 3
      %s348 = scalar_select %p347, %s343, 3
      %p349 = scmp.lt.s32.totalorder %s344, 15
      %s350 = scalar_select %p349, %s344, 15
      %s351 = smul.addr %s348, 16
      %s352 = sadd.s32 %s350, %s351
      %s353 = smul.addr %s346, 64
      %s354 = sadd.s32 %s352, %s353
      %s355 = smul.addr %s354, 8
      %s356 = scalar_lea.vmem %s3, %s355
      %s357 = smul.u32 4, %s24
      %s358 = smul.u32 16, %s23
      %s359 = smul.u32 4, %s24
      %s360 = smul.u32 16, %s23
      %p361 = scmp.lt.s32.totalorder %s22, 1
      %s362 = scalar_select %p361, %s22, 1
      %p363 = scmp.lt.s32.totalorder %s359, 3
      %s364 = scalar_select %p363, %s359, 3
      %p365 = scmp.lt.s32.totalorder %s360, 15
      %s366 = scalar_select %p365, %s360, 15
      %s367 = smul.addr %s364, 16
      %s368 = sadd.s32 %s366, %s367
      %s369 = smul.addr %s362, 64
      %s370 = sadd.s32 %s368, %s369
      %s371 = smul.addr %s370, 8
      %s372 = scalar_lea.vmem %s4, %s371
      %s373 = smul.u32 4, %s24
      %s374 = smul.u32 16, %s23
      %s375 = smul.u32 4, %s24
      %s376 = smul.u32 16, %s23
      %p377 = scmp.lt.s32.totalorder %s22, 1
      %s378 = scalar_select %p377, %s22, 1
      %p379 = scmp.lt.s32.totalorder %s375, 3
      %s380 = scalar_select %p379, %s375, 3
      %p381 = scmp.lt.s32.totalorder %s376, 15
      %s382 = scalar_select %p381, %s376, 15
      %s383 = smul.addr %s380, 16
      %s384 = sadd.s32 %s382, %s383
      %s385 = smul.addr %s378, 64
      %s386 = sadd.s32 %s384, %s385
      %s387 = smul.addr %s386, 8
      %s388 = scalar_lea.vmem %s5, %s387
      %s389 = smul.u32 4, %s24
      %s390 = smul.u32 16, %s23
      %v391 = vld [vmem:[%s333] sm:$0xff]
      %v392 = vld [vmem:[%s333 + $0x8] sm:$0xff]
      %v393 = vld [vmem:[%s333 + $0x10] sm:$0xff]
      %v394 = vld [vmem:[%s333 + $0x18] sm:$0xff]
      %v395 = vld [vmem:[%s333 + $0x20] sm:$0xff]
      %v396 = vld [vmem:[%s333 + $0x28] sm:$0xff]
      %v397 = vld [vmem:[%s333 + $0x30] sm:$0xff]
      %v398 = vld [vmem:[%s333 + $0x38] sm:$0xff]
      %v399 = vld [vmem:[%s333 + $0x40] sm:$0xff]
      %v400 = vld [vmem:[%s333 + $0x48] sm:$0xff]
      %v401 = vld [vmem:[%s333 + $0x50] sm:$0xff]
      %v402 = vld [vmem:[%s333 + $0x58] sm:$0xff]
      %v403 = vld [vmem:[%s333 + $0x60] sm:$0xff]
      %v404 = vld [vmem:[%s333 + $0x68] sm:$0xff]
      %v405 = vld [vmem:[%s333 + $0x70] sm:$0xff]
      %v406 = vld [vmem:[%s333 + $0x78] sm:$0xff]
      %v407 = vld [vmem:[%s339] sm:$0xff]
      %v408 = vld [vmem:[%s339 + $0x8] sm:$0xff]
      %v409 = vld [vmem:[%s339 + $0x10] sm:$0xff]
      %v410 = vld [vmem:[%s339 + $0x18] sm:$0xff]
      %v411 = vld [vmem:[%s342] sm:$0x1]
      %v413 = vperm.slane %v411, 0
      %vm415 = vcmask 261120
      %v417 = vsel %vm415, %v391, 0
      %v420 = vsel %vm415, %v392, 0
      %v423 = vsel %vm415, %v393, 0
      %v426 = vsel %vm415, %v394, 0
      %v429 = vsel %vm415, %v395, 0
      %v432 = vsel %vm415, %v396, 0
      %v435 = vsel %vm415, %v397, 0
      %v438 = vsel %vm415, %v398, 0
      %v441 = vsel %vm415, %v399, 0
      %v444 = vsel %vm415, %v400, 0
      %v447 = vsel %vm415, %v401, 0
      %v450 = vsel %vm415, %v402, 0
      %v453 = vsel %vm415, %v403, 0
      %v456 = vsel %vm415, %v404, 0
      %v459 = vsel %vm415, %v405, 0
      %v462 = vsel %vm415, %v406, 0
      %464 = vmatpush.msra.mxu0 0.0
      %465 = vmatpush.msra.mxu0 0.0
      %466 = vmatpush.msra.mxu0 0.0
      %467 = vmatpush.msra.mxu0 0.0
      %468 = vmatpush.msra.mxu0 0.0
      %469 = vmatpush.msra.mxu0 0.0
      %470 = vmatpush.msra.mxu0 0.0
      %471 = vmatpush.msra.mxu0 0.0
      %472 = vmatpush.msra.mxu0 0.0
      %473 = vmatpush.msra.mxu0 0.0
      %474 = vmatpush.msra.mxu0 0.0
      %475 = vmatpush.msra.mxu0 0.0
      %476 = vmatpush.msra.mxu0 %v410
      %477 = vmatpush.msra.mxu0 %v409
      %478 = vmatpush.msra.mxu0 %v408
      %479 = vmatpush.msra.mxu0 %v407
      %480 = vmatmul.f32.gmra.mxu0 %v417
      %v481 = vpop.f32.mrf.mxu0
      %v482 = vadd.f32 %v413, %v481
      %483 = vmatmul.f32.gmra.mxu0 %v420
      %v484 = vpop.f32.mrf.mxu0
      %v485 = vadd.f32 %v413, %v484
      %486 = vmatmul.f32.gmra.mxu0 %v423
      %v487 = vpop.f32.mrf.mxu0
      %v488 = vadd.f32 %v413, %v487
      %489 = vmatmul.f32.gmra.mxu0 %v426
      %v490 = vpop.f32.mrf.mxu0
      %v491 = vadd.f32 %v413, %v490
      %492 = vmatmul.f32.gmra.mxu0 %v429
      %v493 = vpop.f32.mrf.mxu0
      %v494 = vadd.f32 %v413, %v493
      %495 = vmatmul.f32.gmra.mxu0 %v432
      %v496 = vpop.f32.mrf.mxu0
      %v497 = vadd.f32 %v413, %v496
      %498 = vmatmul.f32.gmra.mxu0 %v435
      %v499 = vpop.f32.mrf.mxu0
      %v500 = vadd.f32 %v413, %v499
      %501 = vmatmul.f32.gmra.mxu0 %v438
      %v502 = vpop.f32.mrf.mxu0
      %v503 = vadd.f32 %v413, %v502
      %504 = vmatmul.f32.gmra.mxu0 %v441
      %v505 = vpop.f32.mrf.mxu0
      %v506 = vadd.f32 %v413, %v505
      %507 = vmatmul.f32.gmra.mxu0 %v444
      %v508 = vpop.f32.mrf.mxu0
      %v509 = vadd.f32 %v413, %v508
      %510 = vmatmul.f32.gmra.mxu0 %v447
      %v511 = vpop.f32.mrf.mxu0
      %v512 = vadd.f32 %v413, %v511
      %513 = vmatmul.f32.gmra.mxu0 %v450
      %v514 = vpop.f32.mrf.mxu0
      %v515 = vadd.f32 %v413, %v514
      %516 = vmatmul.f32.gmra.mxu0 %v453
      %v517 = vpop.f32.mrf.mxu0
      %v518 = vadd.f32 %v413, %v517
      %519 = vmatmul.f32.gmra.mxu0 %v456
      %v520 = vpop.f32.mrf.mxu0
      %v521 = vadd.f32 %v413, %v520
      %522 = vmatmul.f32.gmra.mxu0 %v459
      %v523 = vpop.f32.mrf.mxu0
      %v524 = vadd.f32 %v413, %v523
      %525 = vmatmul.f32.gmra.mxu0 %v462
      %v526 = vpop.f32.mrf.mxu0
      %v527 = vadd.f32 %v413, %v526
      %528 = vdwg.mxu0
      %vm529 = vcmask 64512
      %530 = vst.msk [vmem:[%s356] sm:$0xff] %vm529, %v482
      %531 = vst.msk [vmem:[%s356 + $0x8] sm:$0xff] %vm529, %v485
      %532 = vst.msk [vmem:[%s356 + $0x10] sm:$0xff] %vm529, %v488
      %533 = vst.msk [vmem:[%s356 + $0x18] sm:$0xff] %vm529, %v491
      %534 = vst.msk [vmem:[%s356 + $0x20] sm:$0xff] %vm529, %v494
      %535 = vst.msk [vmem:[%s356 + $0x28] sm:$0xff] %vm529, %v497
      %536 = vst.msk [vmem:[%s356 + $0x30] sm:$0xff] %vm529, %v500
      %537 = vst.msk [vmem:[%s356 + $0x38] sm:$0xff] %vm529, %v503
      %538 = vst.msk [vmem:[%s356 + $0x40] sm:$0xff] %vm529, %v506
      %539 = vst.msk [vmem:[%s356 + $0x48] sm:$0xff] %vm529, %v509
      %540 = vst.msk [vmem:[%s356 + $0x50] sm:$0xff] %vm529, %v512
      %541 = vst.msk [vmem:[%s356 + $0x58] sm:$0xff] %vm529, %v515
      %542 = vst.msk [vmem:[%s356 + $0x60] sm:$0xff] %vm529, %v518
      %543 = vst.msk [vmem:[%s356 + $0x68] sm:$0xff] %vm529, %v521
      %544 = vst.msk [vmem:[%s356 + $0x70] sm:$0xff] %vm529, %v524
      %545 = vst.msk [vmem:[%s356 + $0x78] sm:$0xff] %vm529, %v527
      %562 = vrot.lane.b32.xlu0 %v482, 96
      %v563 = vpop.permute.xlu0 %562
      %564 = vrot.lane.b32.xlu0 %v485, 96
      %v565 = vpop.permute.xlu0 %564
      %566 = vrot.lane.b32.xlu0 %v488, 96
      %v567 = vpop.permute.xlu0 %566
      %568 = vrot.lane.b32.xlu0 %v491, 96
      %v569 = vpop.permute.xlu0 %568
      %570 = vrot.lane.b32.xlu0 %v494, 96
      %v571 = vpop.permute.xlu0 %570
      %572 = vrot.lane.b32.xlu0 %v497, 96
      %v573 = vpop.permute.xlu0 %572
      %574 = vrot.lane.b32.xlu0 %v500, 96
      %v575 = vpop.permute.xlu0 %574
      %576 = vrot.lane.b32.xlu0 %v503, 96
      %v577 = vpop.permute.xlu0 %576
      %578 = vrot.lane.b32.xlu0 %v506, 96
      %v579 = vpop.permute.xlu0 %578
      %580 = vrot.lane.b32.xlu0 %v509, 96
      %v581 = vpop.permute.xlu0 %580
      %582 = vrot.lane.b32.xlu0 %v512, 96
      %v583 = vpop.permute.xlu0 %582
      %584 = vrot.lane.b32.xlu0 %v515, 96
      %v585 = vpop.permute.xlu0 %584
      %586 = vrot.lane.b32.xlu0 %v518, 96
      %v587 = vpop.permute.xlu0 %586
      %588 = vrot.lane.b32.xlu0 %v521, 96
      %v589 = vpop.permute.xlu0 %588
      %590 = vrot.lane.b32.xlu0 %v524, 96
      %v591 = vpop.permute.xlu0 %590
      %592 = vrot.lane.b32.xlu0 %v527, 96
      %v593 = vpop.permute.xlu0 %592
      %610 = vst.msk [vmem:[%s372] sm:$0xff] %vm529, %v563
      %611 = vst.msk [vmem:[%s372 + $0x8] sm:$0xff] %vm529, %v565
      %612 = vst.msk [vmem:[%s372 + $0x10] sm:$0xff] %vm529, %v567
      %613 = vst.msk [vmem:[%s372 + $0x18] sm:$0xff] %vm529, %v569
      %614 = vst.msk [vmem:[%s372 + $0x20] sm:$0xff] %vm529, %v571
      %615 = vst.msk [vmem:[%s372 + $0x28] sm:$0xff] %vm529, %v573
      %616 = vst.msk [vmem:[%s372 + $0x30] sm:$0xff] %vm529, %v575
      %617 = vst.msk [vmem:[%s372 + $0x38] sm:$0xff] %vm529, %v577
      %618 = vst.msk [vmem:[%s372 + $0x40] sm:$0xff] %vm529, %v579
      %619 = vst.msk [vmem:[%s372 + $0x48] sm:$0xff] %vm529, %v581
      %620 = vst.msk [vmem:[%s372 + $0x50] sm:$0xff] %vm529, %v583
      %621 = vst.msk [vmem:[%s372 + $0x58] sm:$0xff] %vm529, %v585
      %622 = vst.msk [vmem:[%s372 + $0x60] sm:$0xff] %vm529, %v587
      %623 = vst.msk [vmem:[%s372 + $0x68] sm:$0xff] %vm529, %v589
      %624 = vst.msk [vmem:[%s372 + $0x70] sm:$0xff] %vm529, %v591
      %625 = vst.msk [vmem:[%s372 + $0x78] sm:$0xff] %vm529, %v593
      %626 = vrot.lane.b32.xlu0 %v482, 64
      %v627 = vpop.permute.xlu0 %626
      %628 = vrot.lane.b32.xlu0 %v485, 64
      %v629 = vpop.permute.xlu0 %628
      %630 = vrot.lane.b32.xlu0 %v488, 64
      %v631 = vpop.permute.xlu0 %630
      %632 = vrot.lane.b32.xlu0 %v491, 64
      %v633 = vpop.permute.xlu0 %632
      %634 = vrot.lane.b32.xlu0 %v494, 64
      %v635 = vpop.permute.xlu0 %634
      %636 = vrot.lane.b32.xlu0 %v497, 64
      %v637 = vpop.permute.xlu0 %636
      %638 = vrot.lane.b32.xlu0 %v500, 64
      %v639 = vpop.permute.xlu0 %638
      %640 = vrot.lane.b32.xlu0 %v503, 64
      %v641 = vpop.permute.xlu0 %640
      %642 = vrot.lane.b32.xlu0 %v506, 64
      %v643 = vpop.permute.xlu0 %642
      %644 = vrot.lane.b32.xlu0 %v509, 64
      %v645 = vpop.permute.xlu0 %644
      %646 = vrot.lane.b32.xlu0 %v512, 64
      %v647 = vpop.permute.xlu0 %646
      %648 = vrot.lane.b32.xlu0 %v515, 64
      %v649 = vpop.permute.xlu0 %648
      %650 = vrot.lane.b32.xlu0 %v518, 64
      %v651 = vpop.permute.xlu0 %650
      %652 = vrot.lane.b32.xlu0 %v521, 64
      %v653 = vpop.permute.xlu0 %652
      %654 = vrot.lane.b32.xlu0 %v524, 64
      %v655 = vpop.permute.xlu0 %654
      %656 = vrot.lane.b32.xlu0 %v527, 64
      %v657 = vpop.permute.xlu0 %656
      %674 = vst.msk [vmem:[%s388] sm:$0xff] %vm529, %v627
      %675 = vst.msk [vmem:[%s388 + $0x8] sm:$0xff] %vm529, %v629
      %676 = vst.msk [vmem:[%s388 + $0x10] sm:$0xff] %vm529, %v631
      %677 = vst.msk [vmem:[%s388 + $0x18] sm:$0xff] %vm529, %v633
      %678 = vst.msk [vmem:[%s388 + $0x20] sm:$0xff] %vm529, %v635
      %679 = vst.msk [vmem:[%s388 + $0x28] sm:$0xff] %vm529, %v637
      %680 = vst.msk [vmem:[%s388 + $0x30] sm:$0xff] %vm529, %v639
      %681 = vst.msk [vmem:[%s388 + $0x38] sm:$0xff] %vm529, %v641
      %682 = vst.msk [vmem:[%s388 + $0x40] sm:$0xff] %vm529, %v643
      %683 = vst.msk [vmem:[%s388 + $0x48] sm:$0xff] %vm529, %v645
      %684 = vst.msk [vmem:[%s388 + $0x50] sm:$0xff] %vm529, %v647
      %685 = vst.msk [vmem:[%s388 + $0x58] sm:$0xff] %vm529, %v649
      %686 = vst.msk [vmem:[%s388 + $0x60] sm:$0xff] %vm529, %v651
      %687 = vst.msk [vmem:[%s388 + $0x68] sm:$0xff] %vm529, %v653
      %688 = vst.msk [vmem:[%s388 + $0x70] sm:$0xff] %vm529, %v655
      %689 = vst.msk [vmem:[%s388 + $0x78] sm:$0xff] %vm529, %v657
      %690 = vrot.lane.b32.xlu0 %v482, 120
      %v691 = vpop.permute.xlu0 %690
      %692 = vrot.lane.b32.xlu0 %v485, 120
      %v693 = vpop.permute.xlu0 %692
      %694 = vrot.lane.b32.xlu0 %v488, 120
      %v695 = vpop.permute.xlu0 %694
      %696 = vrot.lane.b32.xlu0 %v491, 120
      %v697 = vpop.permute.xlu0 %696
      %698 = vrot.lane.b32.xlu0 %v494, 120
      %v699 = vpop.permute.xlu0 %698
      %700 = vrot.lane.b32.xlu0 %v497, 120
      %v701 = vpop.permute.xlu0 %700
      %702 = vrot.lane.b32.xlu0 %v500, 120
      %v703 = vpop.permute.xlu0 %702
      %704 = vrot.lane.b32.xlu0 %v503, 120
      %v705 = vpop.permute.xlu0 %704
      %706 = vrot.lane.b32.xlu0 %v506, 120
      %v707 = vpop.permute.xlu0 %706
      %708 = vrot.lane.b32.xlu0 %v509, 120
      %v709 = vpop.permute.xlu0 %708
      %710 = vrot.lane.b32.xlu0 %v512, 120
      %v711 = vpop.permute.xlu0 %710
      %712 = vrot.lane.b32.xlu0 %v515, 120
      %v713 = vpop.permute.xlu0 %712
      %714 = vrot.lane.b32.xlu0 %v518, 120
      %v715 = vpop.permute.xlu0 %714
      %716 = vrot.lane.b32.xlu0 %v521, 120
      %v717 = vpop.permute.xlu0 %716
      %718 = vrot.lane.b32.xlu0 %v524, 120
      %v719 = vpop.permute.xlu0 %718
      %720 = vrot.lane.b32.xlu0 %v527, 120
      %v721 = vpop.permute.xlu0 %720
      %s738 = scalar_lea.vmem %s356, 128
      %739 = vst.msk [vmem:[%s738] sm:$0xff] %vm529, %v691
      %740 = vst.msk [vmem:[%s738 + $0x8] sm:$0xff] %vm529, %v693
      %741 = vst.msk [vmem:[%s738 + $0x10] sm:$0xff] %vm529, %v695
      %742 = vst.msk [vmem:[%s738 + $0x18] sm:$0xff] %vm529, %v697
      %743 = vst.msk [vmem:[%s738 + $0x20] sm:$0xff] %vm529, %v699
      %744 = vst.msk [vmem:[%s738 + $0x28] sm:$0xff] %vm529, %v701
      %745 = vst.msk [vmem:[%s738 + $0x30] sm:$0xff] %vm529, %v703
      %746 = vst.msk [vmem:[%s738 + $0x38] sm:$0xff] %vm529, %v705
      %747 = vst.msk [vmem:[%s738 + $0x40] sm:$0xff] %vm529, %v707
      %748 = vst.msk [vmem:[%s738 + $0x48] sm:$0xff] %vm529, %v709
      %749 = vst.msk [vmem:[%s738 + $0x50] sm:$0xff] %vm529, %v711
      %750 = vst.msk [vmem:[%s738 + $0x58] sm:$0xff] %vm529, %v713
      %751 = vst.msk [vmem:[%s738 + $0x60] sm:$0xff] %vm529, %v715
      %752 = vst.msk [vmem:[%s738 + $0x68] sm:$0xff] %vm529, %v717
      %753 = vst.msk [vmem:[%s738 + $0x70] sm:$0xff] %vm529, %v719
      %754 = vst.msk [vmem:[%s738 + $0x78] sm:$0xff] %vm529, %v721
      %755 = vrot.lane.b32.xlu0 %v482, 88
      %v756 = vpop.permute.xlu0 %755
      %757 = vrot.lane.b32.xlu0 %v485, 88
      %v758 = vpop.permute.xlu0 %757
      %759 = vrot.lane.b32.xlu0 %v488, 88
      %v760 = vpop.permute.xlu0 %759
      %761 = vrot.lane.b32.xlu0 %v491, 88
      %v762 = vpop.permute.xlu0 %761
      %763 = vrot.lane.b32.xlu0 %v494, 88
      %v764 = vpop.permute.xlu0 %763
      %765 = vrot.lane.b32.xlu0 %v497, 88
      %v766 = vpop.permute.xlu0 %765
      %767 = vrot.lane.b32.xlu0 %v500, 88
      %v768 = vpop.permute.xlu0 %767
      %769 = vrot.lane.b32.xlu0 %v503, 88
      %v770 = vpop.permute.xlu0 %769
      %771 = vrot.lane.b32.xlu0 %v506, 88
      %v772 = vpop.permute.xlu0 %771
      %773 = vrot.lane.b32.xlu0 %v509, 88
      %v774 = vpop.permute.xlu0 %773
      %775 = vrot.lane.b32.xlu0 %v512, 88
      %v776 = vpop.permute.xlu0 %775
      %777 = vrot.lane.b32.xlu0 %v515, 88
      %v778 = vpop.permute.xlu0 %777
      %779 = vrot.lane.b32.xlu0 %v518, 88
      %v780 = vpop.permute.xlu0 %779
      %781 = vrot.lane.b32.xlu0 %v521, 88
      %v782 = vpop.permute.xlu0 %781
      %783 = vrot.lane.b32.xlu0 %v524, 88
      %v784 = vpop.permute.xlu0 %783
      %785 = vrot.lane.b32.xlu0 %v527, 88
      %v786 = vpop.permute.xlu0 %785
      %s803 = scalar_lea.vmem %s372, 128
      %804 = vst.msk [vmem:[%s803] sm:$0xff] %vm529, %v756
      %805 = vst.msk [vmem:[%s803 + $0x8] sm:$0xff] %vm529, %v758
      %806 = vst.msk [vmem:[%s803 + $0x10] sm:$0xff] %vm529, %v760
      %807 = vst.msk [vmem:[%s803 + $0x18] sm:$0xff] %vm529, %v762
      %808 = vst.msk [vmem:[%s803 + $0x20] sm:$0xff] %vm529, %v764
      %809 = vst.msk [vmem:[%s803 + $0x28] sm:$0xff] %vm529, %v766
      %810 = vst.msk [vmem:[%s803 + $0x30] sm:$0xff] %vm529, %v768
      %811 = vst.msk [vmem:[%s803 + $0x38] sm:$0xff] %vm529, %v770
      %812 = vst.msk [vmem:[%s803 + $0x40] sm:$0xff] %vm529, %v772
      %813 = vst.msk [vmem:[%s803 + $0x48] sm:$0xff] %vm529, %v774
      %814 = vst.msk [vmem:[%s803 + $0x50] sm:$0xff] %vm529, %v776
      %815 = vst.msk [vmem:[%s803 + $0x58] sm:$0xff] %vm529, %v778
      %816 = vst.msk [vmem:[%s803 + $0x60] sm:$0xff] %vm529, %v780
      %817 = vst.msk [vmem:[%s803 + $0x68] sm:$0xff] %vm529, %v782
      %818 = vst.msk [vmem:[%s803 + $0x70] sm:$0xff] %vm529, %v784
      %819 = vst.msk [vmem:[%s803 + $0x78] sm:$0xff] %vm529, %v786
      %820 = vrot.lane.b32.xlu0 %v482, 56
      %v821 = vpop.permute.xlu0 %820
      %822 = vrot.lane.b32.xlu0 %v485, 56
      %v823 = vpop.permute.xlu0 %822
      %824 = vrot.lane.b32.xlu0 %v488, 56
      %v825 = vpop.permute.xlu0 %824
      %826 = vrot.lane.b32.xlu0 %v491, 56
      %v827 = vpop.permute.xlu0 %826
      %828 = vrot.lane.b32.xlu0 %v494, 56
      %v829 = vpop.permute.xlu0 %828
      %830 = vrot.lane.b32.xlu0 %v497, 56
      %v831 = vpop.permute.xlu0 %830
      %832 = vrot.lane.b32.xlu0 %v500, 56
      %v833 = vpop.permute.xlu0 %832
      %834 = vrot.lane.b32.xlu0 %v503, 56
      %v835 = vpop.permute.xlu0 %834
      %836 = vrot.lane.b32.xlu0 %v506, 56
      %v837 = vpop.permute.xlu0 %836
      %838 = vrot.lane.b32.xlu0 %v509, 56
      %v839 = vpop.permute.xlu0 %838
      %840 = vrot.lane.b32.xlu0 %v512, 56
      %v841 = vpop.permute.xlu0 %840
      %842 = vrot.lane.b32.xlu0 %v515, 56
      %v843 = vpop.permute.xlu0 %842
      %844 = vrot.lane.b32.xlu0 %v518, 56
      %v845 = vpop.permute.xlu0 %844
      %846 = vrot.lane.b32.xlu0 %v521, 56
      %v847 = vpop.permute.xlu0 %846
      %848 = vrot.lane.b32.xlu0 %v524, 56
      %v849 = vpop.permute.xlu0 %848
      %850 = vrot.lane.b32.xlu0 %v527, 56
      %v851 = vpop.permute.xlu0 %850
      %s868 = scalar_lea.vmem %s388, 128
      %869 = vst.msk [vmem:[%s868] sm:$0xff] %vm529, %v821
      %870 = vst.msk [vmem:[%s868 + $0x8] sm:$0xff] %vm529, %v823
      %871 = vst.msk [vmem:[%s868 + $0x10] sm:$0xff] %vm529, %v825
      %872 = vst.msk [vmem:[%s868 + $0x18] sm:$0xff] %vm529, %v827
      %873 = vst.msk [vmem:[%s868 + $0x20] sm:$0xff] %vm529, %v829
      %874 = vst.msk [vmem:[%s868 + $0x28] sm:$0xff] %vm529, %v831
      %875 = vst.msk [vmem:[%s868 + $0x30] sm:$0xff] %vm529, %v833
      %876 = vst.msk [vmem:[%s868 + $0x38] sm:$0xff] %vm529, %v835
      %877 = vst.msk [vmem:[%s868 + $0x40] sm:$0xff] %vm529, %v837
      %878 = vst.msk [vmem:[%s868 + $0x48] sm:$0xff] %vm529, %v839
      %879 = vst.msk [vmem:[%s868 + $0x50] sm:$0xff] %vm529, %v841
      %880 = vst.msk [vmem:[%s868 + $0x58] sm:$0xff] %vm529, %v843
      %881 = vst.msk [vmem:[%s868 + $0x60] sm:$0xff] %vm529, %v845
      %882 = vst.msk [vmem:[%s868 + $0x68] sm:$0xff] %vm529, %v847
      %883 = vst.msk [vmem:[%s868 + $0x70] sm:$0xff] %vm529, %v849
      %884 = vst.msk [vmem:[%s868 + $0x78] sm:$0xff] %vm529, %v851
      %885 = vrot.lane.b32.xlu0 %v482, 112
      %v886 = vpop.permute.xlu0 %885
      %887 = vrot.lane.b32.xlu0 %v485, 112
      %v888 = vpop.permute.xlu0 %887
      %889 = vrot.lane.b32.xlu0 %v488, 112
      %v890 = vpop.permute.xlu0 %889
      %891 = vrot.lane.b32.xlu0 %v491, 112
      %v892 = vpop.permute.xlu0 %891
      %893 = vrot.lane.b32.xlu0 %v494, 112
      %v894 = vpop.permute.xlu0 %893
      %895 = vrot.lane.b32.xlu0 %v497, 112
      %v896 = vpop.permute.xlu0 %895
      %897 = vrot.lane.b32.xlu0 %v500, 112
      %v898 = vpop.permute.xlu0 %897
      %899 = vrot.lane.b32.xlu0 %v503, 112
      %v900 = vpop.permute.xlu0 %899
      %901 = vrot.lane.b32.xlu0 %v506, 112
      %v902 = vpop.permute.xlu0 %901
      %903 = vrot.lane.b32.xlu0 %v509, 112
      %v904 = vpop.permute.xlu0 %903
      %905 = vrot.lane.b32.xlu0 %v512, 112
      %v906 = vpop.permute.xlu0 %905
      %907 = vrot.lane.b32.xlu0 %v515, 112
      %v908 = vpop.permute.xlu0 %907
      %909 = vrot.lane.b32.xlu0 %v518, 112
      %v910 = vpop.permute.xlu0 %909
      %911 = vrot.lane.b32.xlu0 %v521, 112
      %v912 = vpop.permute.xlu0 %911
      %913 = vrot.lane.b32.xlu0 %v524, 112
      %v914 = vpop.permute.xlu0 %913
      %915 = vrot.lane.b32.xlu0 %v527, 112
      %v916 = vpop.permute.xlu0 %915
      %s933 = scalar_lea.vmem %s356, 256
      %934 = vst.msk [vmem:[%s933] sm:$0xff] %vm529, %v886
      %935 = vst.msk [vmem:[%s933 + $0x8] sm:$0xff] %vm529, %v888
      %936 = vst.msk [vmem:[%s933 + $0x10] sm:$0xff] %vm529, %v890
      %937 = vst.msk [vmem:[%s933 + $0x18] sm:$0xff] %vm529, %v892
      %938 = vst.msk [vmem:[%s933 + $0x20] sm:$0xff] %vm529, %v894
      %939 = vst.msk [vmem:[%s933 + $0x28] sm:$0xff] %vm529, %v896
      %940 = vst.msk [vmem:[%s933 + $0x30] sm:$0xff] %vm529, %v898
      %941 = vst.msk [vmem:[%s933 + $0x38] sm:$0xff] %vm529, %v900
      %942 = vst.msk [vmem:[%s933 + $0x40] sm:$0xff] %vm529, %v902
      %943 = vst.msk [vmem:[%s933 + $0x48] sm:$0xff] %vm529, %v904
      %944 = vst.msk [vmem:[%s933 + $0x50] sm:$0xff] %vm529, %v906
      %945 = vst.msk [vmem:[%s933 + $0x58] sm:$0xff] %vm529, %v908
      %946 = vst.msk [vmem:[%s933 + $0x60] sm:$0xff] %vm529, %v910
      %947 = vst.msk [vmem:[%s933 + $0x68] sm:$0xff] %vm529, %v912
      %948 = vst.msk [vmem:[%s933 + $0x70] sm:$0xff] %vm529, %v914
      %949 = vst.msk [vmem:[%s933 + $0x78] sm:$0xff] %vm529, %v916
      %950 = vrot.lane.b32.xlu0 %v482, 80
      %v951 = vpop.permute.xlu0 %950
      %952 = vrot.lane.b32.xlu0 %v485, 80
      %v953 = vpop.permute.xlu0 %952
      %954 = vrot.lane.b32.xlu0 %v488, 80
      %v955 = vpop.permute.xlu0 %954
      %956 = vrot.lane.b32.xlu0 %v491, 80
      %v957 = vpop.permute.xlu0 %956
      %958 = vrot.lane.b32.xlu0 %v494, 80
      %v959 = vpop.permute.xlu0 %958
      %960 = vrot.lane.b32.xlu0 %v497, 80
      %v961 = vpop.permute.xlu0 %960
      %962 = vrot.lane.b32.xlu0 %v500, 80
      %v963 = vpop.permute.xlu0 %962
      %964 = vrot.lane.b32.xlu0 %v503, 80
      %v965 = vpop.permute.xlu0 %964
      %966 = vrot.lane.b32.xlu0 %v506, 80
      %v967 = vpop.permute.xlu0 %966
      %968 = vrot.lane.b32.xlu0 %v509, 80
      %v969 = vpop.permute.xlu0 %968
      %970 = vrot.lane.b32.xlu0 %v512, 80
      %v971 = vpop.permute.xlu0 %970
      %972 = vrot.lane.b32.xlu0 %v515, 80
      %v973 = vpop.permute.xlu0 %972
      %974 = vrot.lane.b32.xlu0 %v518, 80
      %v975 = vpop.permute.xlu0 %974
      %976 = vrot.lane.b32.xlu0 %v521, 80
      %v977 = vpop.permute.xlu0 %976
      %978 = vrot.lane.b32.xlu0 %v524, 80
      %v979 = vpop.permute.xlu0 %978
      %980 = vrot.lane.b32.xlu0 %v527, 80
      %v981 = vpop.permute.xlu0 %980
      %s998 = scalar_lea.vmem %s372, 256
      %999 = vst.msk [vmem:[%s998] sm:$0xff] %vm529, %v951
      %1000 = vst.msk [vmem:[%s998 + $0x8] sm:$0xff] %vm529, %v953
      %1001 = vst.msk [vmem:[%s998 + $0x10] sm:$0xff] %vm529, %v955
      %1002 = vst.msk [vmem:[%s998 + $0x18] sm:$0xff] %vm529, %v957
      %1003 = vst.msk [vmem:[%s998 + $0x20] sm:$0xff] %vm529, %v959
      %1004 = vst.msk [vmem:[%s998 + $0x28] sm:$0xff] %vm529, %v961
      %1005 = vst.msk [vmem:[%s998 + $0x30] sm:$0xff] %vm529, %v963
      %1006 = vst.msk [vmem:[%s998 + $0x38] sm:$0xff] %vm529, %v965
      %1007 = vst.msk [vmem:[%s998 + $0x40] sm:$0xff] %vm529, %v967
      %1008 = vst.msk [vmem:[%s998 + $0x48] sm:$0xff] %vm529, %v969
      %1009 = vst.msk [vmem:[%s998 + $0x50] sm:$0xff] %vm529, %v971
      %1010 = vst.msk [vmem:[%s998 + $0x58] sm:$0xff] %vm529, %v973
      %1011 = vst.msk [vmem:[%s998 + $0x60] sm:$0xff] %vm529, %v975
      %1012 = vst.msk [vmem:[%s998 + $0x68] sm:$0xff] %vm529, %v977
      %1013 = vst.msk [vmem:[%s998 + $0x70] sm:$0xff] %vm529, %v979
      %1014 = vst.msk [vmem:[%s998 + $0x78] sm:$0xff] %vm529, %v981
      %1015 = vrot.lane.b32.xlu0 %v482, 48
      %v1016 = vpop.permute.xlu0 %1015
      %1017 = vrot.lane.b32.xlu0 %v485, 48
      %v1018 = vpop.permute.xlu0 %1017
      %1019 = vrot.lane.b32.xlu0 %v488, 48
      %v1020 = vpop.permute.xlu0 %1019
      %1021 = vrot.lane.b32.xlu0 %v491, 48
      %v1022 = vpop.permute.xlu0 %1021
      %1023 = vrot.lane.b32.xlu0 %v494, 48
      %v1024 = vpop.permute.xlu0 %1023
      %1025 = vrot.lane.b32.xlu0 %v497, 48
      %v1026 = vpop.permute.xlu0 %1025
      %1027 = vrot.lane.b32.xlu0 %v500, 48
      %v1028 = vpop.permute.xlu0 %1027
      %1029 = vrot.lane.b32.xlu0 %v503, 48
      %v1030 = vpop.permute.xlu0 %1029
      %1031 = vrot.lane.b32.xlu0 %v506, 48
      %v1032 = vpop.permute.xlu0 %1031
      %1033 = vrot.lane.b32.xlu0 %v509, 48
      %v1034 = vpop.permute.xlu0 %1033
      %1035 = vrot.lane.b32.xlu0 %v512, 48
      %v1036 = vpop.permute.xlu0 %1035
      %1037 = vrot.lane.b32.xlu0 %v515, 48
      %v1038 = vpop.permute.xlu0 %1037
      %1039 = vrot.lane.b32.xlu0 %v518, 48
      %v1040 = vpop.permute.xlu0 %1039
      %1041 = vrot.lane.b32.xlu0 %v521, 48
      %v1042 = vpop.permute.xlu0 %1041
      %1043 = vrot.lane.b32.xlu0 %v524, 48
      %v1044 = vpop.permute.xlu0 %1043
      %1045 = vrot.lane.b32.xlu0 %v527, 48
      %v1046 = vpop.permute.xlu0 %1045
      %s1063 = scalar_lea.vmem %s388, 256
      %1064 = vst.msk [vmem:[%s1063] sm:$0xff] %vm529, %v1016
      %1065 = vst.msk [vmem:[%s1063 + $0x8] sm:$0xff] %vm529, %v1018
      %1066 = vst.msk [vmem:[%s1063 + $0x10] sm:$0xff] %vm529, %v1020
      %1067 = vst.msk [vmem:[%s1063 + $0x18] sm:$0xff] %vm529, %v1022
      %1068 = vst.msk [vmem:[%s1063 + $0x20] sm:$0xff] %vm529, %v1024
      %1069 = vst.msk [vmem:[%s1063 + $0x28] sm:$0xff] %vm529, %v1026
      %1070 = vst.msk [vmem:[%s1063 + $0x30] sm:$0xff] %vm529, %v1028
      %1071 = vst.msk [vmem:[%s1063 + $0x38] sm:$0xff] %vm529, %v1030
      %1072 = vst.msk [vmem:[%s1063 + $0x40] sm:$0xff] %vm529, %v1032
      %1073 = vst.msk [vmem:[%s1063 + $0x48] sm:$0xff] %vm529, %v1034
      %1074 = vst.msk [vmem:[%s1063 + $0x50] sm:$0xff] %vm529, %v1036
      %1075 = vst.msk [vmem:[%s1063 + $0x58] sm:$0xff] %vm529, %v1038
      %1076 = vst.msk [vmem:[%s1063 + $0x60] sm:$0xff] %vm529, %v1040
      %1077 = vst.msk [vmem:[%s1063 + $0x68] sm:$0xff] %vm529, %v1042
      %1078 = vst.msk [vmem:[%s1063 + $0x70] sm:$0xff] %vm529, %v1044
      %1079 = vst.msk [vmem:[%s1063 + $0x78] sm:$0xff] %vm529, %v1046
      %1080 = vrot.lane.b32.xlu0 %v482, 104
      %v1081 = vpop.permute.xlu0 %1080
      %1082 = vrot.lane.b32.xlu0 %v485, 104
      %v1083 = vpop.permute.xlu0 %1082
      %1084 = vrot.lane.b32.xlu0 %v488, 104
      %v1085 = vpop.permute.xlu0 %1084
      %1086 = vrot.lane.b32.xlu0 %v491, 104
      %v1087 = vpop.permute.xlu0 %1086
      %1088 = vrot.lane.b32.xlu0 %v494, 104
      %v1089 = vpop.permute.xlu0 %1088
      %1090 = vrot.lane.b32.xlu0 %v497, 104
      %v1091 = vpop.permute.xlu0 %1090
      %1092 = vrot.lane.b32.xlu0 %v500, 104
      %v1093 = vpop.permute.xlu0 %1092
      %1094 = vrot.lane.b32.xlu0 %v503, 104
      %v1095 = vpop.permute.xlu0 %1094
      %1096 = vrot.lane.b32.xlu0 %v506, 104
      %v1097 = vpop.permute.xlu0 %1096
      %1098 = vrot.lane.b32.xlu0 %v509, 104
      %v1099 = vpop.permute.xlu0 %1098
      %1100 = vrot.lane.b32.xlu0 %v512, 104
      %v1101 = vpop.permute.xlu0 %1100
      %1102 = vrot.lane.b32.xlu0 %v515, 104
      %v1103 = vpop.permute.xlu0 %1102
      %1104 = vrot.lane.b32.xlu0 %v518, 104
      %v1105 = vpop.permute.xlu0 %1104
      %1106 = vrot.lane.b32.xlu0 %v521, 104
      %v1107 = vpop.permute.xlu0 %1106
      %1108 = vrot.lane.b32.xlu0 %v524, 104
      %v1109 = vpop.permute.xlu0 %1108
      %1110 = vrot.lane.b32.xlu0 %v527, 104
      %v1111 = vpop.permute.xlu0 %1110
      %s1128 = scalar_lea.vmem %s356, 384
      %1129 = vst.msk [vmem:[%s1128] sm:$0xff] %vm529, %v1081
      %1130 = vst.msk [vmem:[%s1128 + $0x8] sm:$0xff] %vm529, %v1083
      %1131 = vst.msk [vmem:[%s1128 + $0x10] sm:$0xff] %vm529, %v1085
      %1132 = vst.msk [vmem:[%s1128 + $0x18] sm:$0xff] %vm529, %v1087
      %1133 = vst.msk [vmem:[%s1128 + $0x20] sm:$0xff] %vm529, %v1089
      %1134 = vst.msk [vmem:[%s1128 + $0x28] sm:$0xff] %vm529, %v1091
      %1135 = vst.msk [vmem:[%s1128 + $0x30] sm:$0xff] %vm529, %v1093
      %1136 = vst.msk [vmem:[%s1128 + $0x38] sm:$0xff] %vm529, %v1095
      %1137 = vst.msk [vmem:[%s1128 + $0x40] sm:$0xff] %vm529, %v1097
      %1138 = vst.msk [vmem:[%s1128 + $0x48] sm:$0xff] %vm529, %v1099
      %1139 = vst.msk [vmem:[%s1128 + $0x50] sm:$0xff] %vm529, %v1101
      %1140 = vst.msk [vmem:[%s1128 + $0x58] sm:$0xff] %vm529, %v1103
      %1141 = vst.msk [vmem:[%s1128 + $0x60] sm:$0xff] %vm529, %v1105
      %1142 = vst.msk [vmem:[%s1128 + $0x68] sm:$0xff] %vm529, %v1107
      %1143 = vst.msk [vmem:[%s1128 + $0x70] sm:$0xff] %vm529, %v1109
      %1144 = vst.msk [vmem:[%s1128 + $0x78] sm:$0xff] %vm529, %v1111
      %1145 = vrot.lane.b32.xlu0 %v482, 72
      %v1146 = vpop.permute.xlu0 %1145
      %1147 = vrot.lane.b32.xlu0 %v485, 72
      %v1148 = vpop.permute.xlu0 %1147
      %1149 = vrot.lane.b32.xlu0 %v488, 72
      %v1150 = vpop.permute.xlu0 %1149
      %1151 = vrot.lane.b32.xlu0 %v491, 72
      %v1152 = vpop.permute.xlu0 %1151
      %1153 = vrot.lane.b32.xlu0 %v494, 72
      %v1154 = vpop.permute.xlu0 %1153
      %1155 = vrot.lane.b32.xlu0 %v497, 72
      %v1156 = vpop.permute.xlu0 %1155
      %1157 = vrot.lane.b32.xlu0 %v500, 72
      %v1158 = vpop.permute.xlu0 %1157
      %1159 = vrot.lane.b32.xlu0 %v503, 72
      %v1160 = vpop.permute.xlu0 %1159
      %1161 = vrot.lane.b32.xlu0 %v506, 72
      %v1162 = vpop.permute.xlu0 %1161
      %1163 = vrot.lane.b32.xlu0 %v509, 72
      %v1164 = vpop.permute.xlu0 %1163
      %1165 = vrot.lane.b32.xlu0 %v512, 72
      %v1166 = vpop.permute.xlu0 %1165
      %1167 = vrot.lane.b32.xlu0 %v515, 72
      %v1168 = vpop.permute.xlu0 %1167
      %1169 = vrot.lane.b32.xlu0 %v518, 72
      %v1170 = vpop.permute.xlu0 %1169
      %1171 = vrot.lane.b32.xlu0 %v521, 72
      %v1172 = vpop.permute.xlu0 %1171
      %1173 = vrot.lane.b32.xlu0 %v524, 72
      %v1174 = vpop.permute.xlu0 %1173
      %1175 = vrot.lane.b32.xlu0 %v527, 72
      %v1176 = vpop.permute.xlu0 %1175
      %s1193 = scalar_lea.vmem %s372, 384
      %1194 = vst.msk [vmem:[%s1193] sm:$0xff] %vm529, %v1146
      %1195 = vst.msk [vmem:[%s1193 + $0x8] sm:$0xff] %vm529, %v1148
      %1196 = vst.msk [vmem:[%s1193 + $0x10] sm:$0xff] %vm529, %v1150
      %1197 = vst.msk [vmem:[%s1193 + $0x18] sm:$0xff] %vm529, %v1152
      %1198 = vst.msk [vmem:[%s1193 + $0x20] sm:$0xff] %vm529, %v1154
      %1199 = vst.msk [vmem:[%s1193 + $0x28] sm:$0xff] %vm529, %v1156
      %1200 = vst.msk [vmem:[%s1193 + $0x30] sm:$0xff] %vm529, %v1158
      %1201 = vst.msk [vmem:[%s1193 + $0x38] sm:$0xff] %vm529, %v1160
      %1202 = vst.msk [vmem:[%s1193 + $0x40] sm:$0xff] %vm529, %v1162
      %1203 = vst.msk [vmem:[%s1193 + $0x48] sm:$0xff] %vm529, %v1164
      %1204 = vst.msk [vmem:[%s1193 + $0x50] sm:$0xff] %vm529, %v1166
      %1205 = vst.msk [vmem:[%s1193 + $0x58] sm:$0xff] %vm529, %v1168
      %1206 = vst.msk [vmem:[%s1193 + $0x60] sm:$0xff] %vm529, %v1170
      %1207 = vst.msk [vmem:[%s1193 + $0x68] sm:$0xff] %vm529, %v1172
      %1208 = vst.msk [vmem:[%s1193 + $0x70] sm:$0xff] %vm529, %v1174
      %1209 = vst.msk [vmem:[%s1193 + $0x78] sm:$0xff] %vm529, %v1176
      %1210 = vrot.lane.b32.xlu0 %v482, 40
      %v1211 = vpop.permute.xlu0 %1210
      %1212 = vrot.lane.b32.xlu0 %v485, 40
      %v1213 = vpop.permute.xlu0 %1212
      %1214 = vrot.lane.b32.xlu0 %v488, 40
      %v1215 = vpop.permute.xlu0 %1214
      %1216 = vrot.lane.b32.xlu0 %v491, 40
      %v1217 = vpop.permute.xlu0 %1216
      %1218 = vrot.lane.b32.xlu0 %v494, 40
      %v1219 = vpop.permute.xlu0 %1218
      %1220 = vrot.lane.b32.xlu0 %v497, 40
      %v1221 = vpop.permute.xlu0 %1220
      %1222 = vrot.lane.b32.xlu0 %v500, 40
      %v1223 = vpop.permute.xlu0 %1222
      %1224 = vrot.lane.b32.xlu0 %v503, 40
      %v1225 = vpop.permute.xlu0 %1224
      %1226 = vrot.lane.b32.xlu0 %v506, 40
      %v1227 = vpop.permute.xlu0 %1226
      %1228 = vrot.lane.b32.xlu0 %v509, 40
      %v1229 = vpop.permute.xlu0 %1228
      %1230 = vrot.lane.b32.xlu0 %v512, 40
      %v1231 = vpop.permute.xlu0 %1230
      %1232 = vrot.lane.b32.xlu0 %v515, 40
      %v1233 = vpop.permute.xlu0 %1232
      %1234 = vrot.lane.b32.xlu0 %v518, 40
      %v1235 = vpop.permute.xlu0 %1234
      %1236 = vrot.lane.b32.xlu0 %v521, 40
      %v1237 = vpop.permute.xlu0 %1236
      %1238 = vrot.lane.b32.xlu0 %v524, 40
      %v1239 = vpop.permute.xlu0 %1238
      %1240 = vrot.lane.b32.xlu0 %v527, 40
      %v1241 = vpop.permute.xlu0 %1240
      %s1258 = scalar_lea.vmem %s388, 384
      %1259 = vst.msk [vmem:[%s1258] sm:$0xff] %vm529, %v1211
      %1260 = vst.msk [vmem:[%s1258 + $0x8] sm:$0xff] %vm529, %v1213
      %1261 = vst.msk [vmem:[%s1258 + $0x10] sm:$0xff] %vm529, %v1215
      %1262 = vst.msk [vmem:[%s1258 + $0x18] sm:$0xff] %vm529, %v1217
      %1263 = vst.msk [vmem:[%s1258 + $0x20] sm:$0xff] %vm529, %v1219
      %1264 = vst.msk [vmem:[%s1258 + $0x28] sm:$0xff] %vm529, %v1221
      %1265 = vst.msk [vmem:[%s1258 + $0x30] sm:$0xff] %vm529, %v1223
      %1266 = vst.msk [vmem:[%s1258 + $0x38] sm:$0xff] %vm529, %v1225
      %1267 = vst.msk [vmem:[%s1258 + $0x40] sm:$0xff] %vm529, %v1227
      %1268 = vst.msk [vmem:[%s1258 + $0x48] sm:$0xff] %vm529, %v1229
      %1269 = vst.msk [vmem:[%s1258 + $0x50] sm:$0xff] %vm529, %v1231
      %1270 = vst.msk [vmem:[%s1258 + $0x58] sm:$0xff] %vm529, %v1233
      %1271 = vst.msk [vmem:[%s1258 + $0x60] sm:$0xff] %vm529, %v1235
      %1272 = vst.msk [vmem:[%s1258 + $0x68] sm:$0xff] %vm529, %v1237
      %1273 = vst.msk [vmem:[%s1258 + $0x70] sm:$0xff] %vm529, %v1239
      %1274 = vst.msk [vmem:[%s1258 + $0x78] sm:$0xff] %vm529, %v1241
      %s1275 = smul.u32 4, %s24
      %s1276 = smul.u32 16, %s23
      %p1277 = scmp.lt.s32.totalorder %s22, 1
      %s1278 = scalar_select %p1277, %s22, 1
      %p1279 = scmp.lt.s32.totalorder %s1275, 3
      %s1280 = scalar_select %p1279, %s1275, 3
      %p1281 = scmp.lt.s32.totalorder %s1276, 15
      %s1282 = scalar_select %p1281, %s1276, 15
      %s1283 = smul.addr %s1280, 16
      %s1284 = sadd.s32 %s1282, %s1283
      %s1285 = smul.addr %s1278, 64
      %s1286 = sadd.s32 %s1284, %s1285
      %s1287 = smul.addr %s1286, 8
      %s1288 = scalar_lea.vmem %s3, %s1287
      %s1289 = smul.u32 4, %s24
      %s1290 = smul.u32 16, %s23
      %p1291 = scmp.lt.s32.totalorder %s22, 1
      %s1292 = scalar_select %p1291, %s22, 1
      %p1293 = scmp.lt.s32.totalorder %s1289, 3
      %s1294 = scalar_select %p1293, %s1289, 3
      %p1295 = scmp.lt.s32.totalorder %s1290, 15
      %s1296 = scalar_select %p1295, %s1290, 15
      %s1297 = smul.addr %s1294, 16
      %s1298 = sadd.s32 %s1296, %s1297
      %s1299 = smul.addr %s1292, 64
      %s1300 = sadd.s32 %s1298, %s1299
      %s1301 = smul.addr %s1300, 8
      %s1302 = scalar_lea.vmem %s4, %s1301
      %s1303 = smul.u32 4, %s24
      %s1304 = smul.u32 16, %s23
      %p1305 = scmp.lt.s32.totalorder %s22, 1
      %s1306 = scalar_select %p1305, %s22, 1
      %p1307 = scmp.lt.s32.totalorder %s1303, 3
      %s1308 = scalar_select %p1307, %s1303, 3
      %p1309 = scmp.lt.s32.totalorder %s1304, 15
      %s1310 = scalar_select %p1309, %s1304, 15
      %s1311 = smul.addr %s1308, 16
      %s1312 = sadd.s32 %s1310, %s1311
      %s1313 = smul.addr %s1306, 64
      %s1314 = sadd.s32 %s1312, %s1313
      %s1315 = smul.addr %s1314, 8
      %s1316 = scalar_lea.vmem %s5, %s1315
      // Predicated region
      $region33: #{multi_head_self_attention.2} parent=31 // pred_check
        %p1317 = pneg %p138
      $region34: #{multi_head_self_attention.2} parent=31 // pred_check_branch
        %1319 = sbr.rel (%p1317) target = $region36
      $region35: #{multi_head_self_attention.2} parent=31 // pred_region
        %s1320 = smul.u32 4, %s24
        %s1321 = smul.u32 16, %s23
      $region36: #{multi_head_self_attention.2} parent=31 // pred_fallthru
        _
      // Predicated region
      $region37: #{multi_head_self_attention.2} parent=31 // pred_check
        %p1322 = pneg %p168
      $region38: #{multi_head_self_attention.2} parent=31 // pred_check_branch
        %1324 = sbr.rel (%p1322) target = $region40
      $region39: #{multi_head_self_attention.2} parent=31 // pred_region
        %s1325 = smul.u32 4, %s24
        %s1326 = smul.u32 16, %s23
      $region40: #{multi_head_self_attention.2} parent=31 // pred_fallthru
        _
      // Predicated region
      $region41: #{multi_head_self_attention.2} parent=31 // pred_check
        %p1327 = pneg %p198
      $region42: #{multi_head_self_attention.2} parent=31 // pred_check_branch
        %1329 = sbr.rel (%p1327) target = $region44
      $region43: #{multi_head_self_attention.2} parent=31 // pred_region
        %s1330 = smul.u32 4, %s24
        %s1331 = smul.u32 16, %s23
      $region44: #{multi_head_self_attention.2} parent=31 // pred_fallthru
        _
    $region32: #{multi_head_self_attention.2} parent=5 // pred_fallthru
      _
    %p1332 = scmp.le.s32.totalorder 2, %s12
    // Predicated region
    $region45: #{multi_head_self_attention.2} parent=5 // pred_check
      %p1333 = pneg %p1332
    $region46: #{multi_head_self_attention.2} parent=5 // pred_check_branch
      %1335 = sbr.rel (%p1333) target = $region48
    $region47: #{multi_head_self_attention.2} parent=5 // pred_region
      %s1336 = ssub.s32 %s12, 2
      // Predicated region
      $region49: #{multi_head_self_attention.2} parent=47 // pred_check
        %p1337 = pneg %p144
      $region50: #{multi_head_self_attention.2} parent=47 // pred_check_branch
        %1339 = sbr.rel (%p1337) target = $region52
      $region51: #{multi_head_self_attention.2} parent=47 // pred_region
        %s1340 = smul.u32 4, %s27
        %s1341 = smul.u32 16, %s26
        %p1342 = scmp.lt.s32.totalorder %s25, 1
        %s1343 = scalar_select %p1342, %s25, 1
        %p1344 = scmp.lt.s32.totalorder %s1340, 3
        %s1345 = scalar_select %p1344, %s1340, 3
        %p1346 = scmp.lt.s32.totalorder %s1341, 15
        %s1347 = scalar_select %p1346, %s1341, 15
        %s1348 = smul.addr %s1345, 16
        %s1349 = sadd.s32 %s1347, %s1348
        %s1350 = smul.addr %s1343, 64
        %s1351 = sadd.s32 %s1349, %s1350
        %s1352 = smul.addr %s1351, 8
        %s1353 = scalar_lea.vmem %s3, %s1352
      $region52: #{multi_head_self_attention.2} parent=47 // pred_fallthru
        _
      // Predicated region
      $region53: #{multi_head_self_attention.2} parent=47 // pred_check
        %p1354 = pneg %p174
      $region54: #{multi_head_self_attention.2} parent=47 // pred_check_branch
        %1356 = sbr.rel (%p1354) target = $region56
      $region55: #{multi_head_self_attention.2} parent=47 // pred_region
        %s1357 = smul.u32 4, %s27
        %s1358 = smul.u32 16, %s26
        %p1359 = scmp.lt.s32.totalorder %s25, 1
        %s1360 = scalar_select %p1359, %s25, 1
        %p1361 = scmp.lt.s32.totalorder %s1357, 3
        %s1362 = scalar_select %p1361, %s1357, 3
        %p1363 = scmp.lt.s32.totalorder %s1358, 15
        %s1364 = scalar_select %p1363, %s1358, 15
        %s1365 = smul.addr %s1362, 16
        %s1366 = sadd.s32 %s1364, %s1365
        %s1367 = smul.addr %s1360, 64
        %s1368 = sadd.s32 %s1366, %s1367
        %s1369 = smul.addr %s1368, 8
        %s1370 = scalar_lea.vmem %s4, %s1369
      $region56: #{multi_head_self_attention.2} parent=47 // pred_fallthru
        _
      // Predicated region
      $region57: #{multi_head_self_attention.2} parent=47 // pred_check
        %p1371 = pneg %p204
      $region58: #{multi_head_self_attention.2} parent=47 // pred_check_branch
        %1373 = sbr.rel (%p1371) target = $region60
      $region59: #{multi_head_self_attention.2} parent=47 // pred_region
        %s1374 = smul.u32 4, %s27
        %s1375 = smul.u32 16, %s26
        %p1376 = scmp.lt.s32.totalorder %s25, 1
        %s1377 = scalar_select %p1376, %s25, 1
        %p1378 = scmp.lt.s32.totalorder %s1374, 3
        %s1379 = scalar_select %p1378, %s1374, 3
        %p1380 = scmp.lt.s32.totalorder %s1375, 15
        %s1381 = scalar_select %p1380, %s1375, 15
        %s1382 = smul.addr %s1379, 16
        %s1383 = sadd.s32 %s1381, %s1382
        %s1384 = smul.addr %s1377, 64
        %s1385 = sadd.s32 %s1383, %s1384
        %s1386 = smul.addr %s1385, 8
        %s1387 = scalar_lea.vmem %s5, %s1386
      $region60: #{multi_head_self_attention.2} parent=47 // pred_fallthru
        _
    $region48: #{multi_head_self_attention.2} parent=5 // pred_fallthru
      _
  $region6: #{multi_head_self_attention.2} parent=0 // loop_footer
    %s16 = sadd.s32 1, %s12
  $region7: #{multi_head_self_attention.2} parent=0 // loop_footer_branch
    %11 = sbr.rel target = $region3
  $region8: #{multi_head_self_attention.2} parent=0 // loop_exit
    _

// kernel: multi_head_self_attention.3
$region0: #{multi_head_self_attention.3}
  #allocation0 [shape = 'u32[]', space=smem, size = 0x4, offset = 0x4, fixed_abs, tag = 'smem constant byte address 0x4 - core index']
  #allocation1 [shape = 'u32[72,128]{1,0:T(1,128)}', space=vmem, size = 0x9000, scoped, tag = 'internal scratch']
  #allocation2 [shape = 'f32[128,1]{1,0:T(8,128)}', space=vmem, size = 0x10000, scoped, tag = 'scratch operand']
  #allocation3 [shape = 'f32[128,1]{1,0:T(8,128)}', space=vmem, size = 0x10000, scoped, tag = 'scratch operand']
  #allocation4 [shape = 'f32[128,8]{1,0:T(8,128)}', space=vmem, size = 0x10000, scoped, tag = 'scratch operand']
  %s0 = inlined_call_operand.vmem [shape: f32[2,4,128,8], index: 0, kind: input, shape index: {}]
  %s1 = inlined_call_operand.vmem [shape: f32[2,4,128,8], index: 1, kind: input, shape index: {}]
  %s2 = inlined_call_operand.vmem [shape: f32[2,4,128,8], index: 2, kind: input, shape index: {}]
  %s3 = inlined_call_operand.vmem [shape: f32[2,4,128,8], index: 3, kind: output, shape index: {}]
  %s4 = sld [smem:[#allocation0]]
  $region53: #{multi_head_self_attention.3} parent=0
    _
  %s6 = ssub.s32 1, %s4
  %s7 = scalar_select 0, %s6, %s4
  loop: start=0, step=1, limit=10
  $region2: #{multi_head_self_attention.3} parent=0 // loop_pre_header
    _
  $region3: #{multi_head_self_attention.3} parent=0 // loop_header
    %s9 = sphi 0, %s13
    %p10 = scmp.ge.s32.totalorder %s9, 10
    %s16 = sphi 0, %s42
    %s17 = sphi 0, %s38
    %s18 = sphi 0, %s34
    %s19 = sphi 0, %s30
    %s20 = sphi 0, %s16
    %s21 = sphi 0, %s17
    %s22 = sphi 0, %s18
    %s23 = sphi 0, %s19
    %s24 = sphi 0, %s20
    %s25 = sphi 0, %s21
    %s26 = sphi 0, %s22
    %s27 = sphi 0, %s23
    %s49 = sphi 0, %s51
    %s52 = sphi 0, %s49
    %s53 = sphi 0, %s52
    %s69 = sphi 0, %s53
    %s77 = sphi 0, %s79
    %s80 = sphi 0, %s77
    %s81 = sphi 0, %s80
    %s97 = sphi 0, %s81
    %s105 = sphi 0, %s107
    %s108 = sphi 0, %s105
    %s109 = sphi 0, %s108
    %s125 = sphi 0, %s109
    %s135 = sphi 0, %s137
    %s138 = sphi 0, %s135
    %s139 = sphi 0, %s138
    %s155 = sphi 0, %s139
  $region4: #{multi_head_self_attention.3} parent=0 // loop_header_branch
    %12 = sbr.rel (%p10) target = $region8
  $region5: #{multi_head_self_attention.3} parent=0 // loop_body
    %s14 = ssub.s32 %s9, 1
    %s15 = ssub.s32 %s9, 2
    %s28 = sadd.s32 1, %s19
    %p29 = scmp.ge.s32.totalorder %s28, 1
    %s30 = scalar_select %p29, 0, %s28
    %s31 = sadd.s32 1, %s18
    %s32 = scalar_select %p29, %s31, %s18
    %p33 = scmp.ge.s32.totalorder %s32, 1
    %s34 = scalar_select %p33, 0, %s32
    %s35 = sadd.s32 1, %s17
    %s36 = scalar_select %p33, %s35, %s17
    %p37 = scmp.ge.s32.totalorder %s36, 4
    %s38 = scalar_select %p37, 0, %s36
    %s39 = sadd.s32 1, %s16
    %s40 = scalar_select %p37, %s39, %s16
    %p41 = scmp.ge.s32.totalorder %s40, 2
    %s42 = scalar_select %p41, 0, %s40
    %s43 = ssub.s32 %s16, %s42
    %s44 = ssub.s32 %s17, %s38
    %s45 = sor.u32 %s43, %s44
    %s46 = ssub.s32 %s18, %s34
    %s47 = sor.u32 %s45, %s46
    %p48 = scmp.eq.s32.totalorder %s47, 0
    %s50 = sadd.s32 %s49, 1
    %s51 = scalar_select %p48, %s49, %s50
    %p54 = pneg %p48
    %p55 = scmp.eq.s32.totalorder %s9, 7
    %p56 = por %p54, %p55
    %p57 = scmp.ne.s32.totalorder %s49, %s52
    %p58 = scmp.eq.s32.totalorder %s9, 0
    %p59 = por %p57, %p58
    %p60 = scmp.ne.s32.totalorder %s49, %s52
    %p61 = scmp.eq.s32.totalorder %s14, 7
    %p62 = por %p60, %p61
    %p63 = scmp.ne.s32.totalorder %s52, %s53
    %p64 = scmp.eq.s32.totalorder %s14, 0
    %p65 = por %p63, %p64
    %p66 = scmp.ne.s32.totalorder %s52, %s53
    %p67 = scmp.eq.s32.totalorder %s15, 7
    %p68 = por %p66, %p67
    %p70 = scmp.ne.s32.totalorder %s53, %s69
    %p71 = scmp.eq.s32.totalorder %s15, 0
    %p72 = por %p70, %p71
    %s73 = ssub.s32 %s16, %s42
    %s74 = ssub.s32 %s17, %s38
    %s75 = sor.u32 %s73, %s74
    %p76 = scmp.eq.s32.totalorder %s75, 0
    %s78 = sadd.s32 %s77, 1
    %s79 = scalar_select %p76, %s77, %s78
    %p82 = pneg %p76
    %p83 = scmp.eq.s32.totalorder %s9, 7
    %p84 = por %p82, %p83
    %p85 = scmp.ne.s32.totalorder %s77, %s80
    %p86 = scmp.eq.s32.totalorder %s9, 0
    %p87 = por %p85, %p86
    %p88 = scmp.ne.s32.totalorder %s77, %s80
    %p89 = scmp.eq.s32.totalorder %s14, 7
    %p90 = por %p88, %p89
    %p91 = scmp.ne.s32.totalorder %s80, %s81
    %p92 = scmp.eq.s32.totalorder %s14, 0
    %p93 = por %p91, %p92
    %p94 = scmp.ne.s32.totalorder %s80, %s81
    %p95 = scmp.eq.s32.totalorder %s15, 7
    %p96 = por %p94, %p95
    %p98 = scmp.ne.s32.totalorder %s81, %s97
    %p99 = scmp.eq.s32.totalorder %s15, 0
    %p100 = por %p98, %p99
    %s101 = ssub.s32 %s16, %s42
    %s102 = ssub.s32 %s17, %s38
    %s103 = sor.u32 %s101, %s102
    %p104 = scmp.eq.s32.totalorder %s103, 0
    %s106 = sadd.s32 %s105, 1
    %s107 = scalar_select %p104, %s105, %s106
    %p110 = pneg %p104
    %p111 = scmp.eq.s32.totalorder %s9, 7
    %p112 = por %p110, %p111
    %p113 = scmp.ne.s32.totalorder %s105, %s108
    %p114 = scmp.eq.s32.totalorder %s9, 0
    %p115 = por %p113, %p114
    %p116 = scmp.ne.s32.totalorder %s105, %s108
    %p117 = scmp.eq.s32.totalorder %s14, 7
    %p118 = por %p116, %p117
    %p119 = scmp.ne.s32.totalorder %s108, %s109
    %p120 = scmp.eq.s32.totalorder %s14, 0
    %p121 = por %p119, %p120
    %p122 = scmp.ne.s32.totalorder %s108, %s109
    %p123 = scmp.eq.s32.totalorder %s15, 7
    %p124 = por %p122, %p123
    %p126 = scmp.ne.s32.totalorder %s109, %s125
    %p127 = scmp.eq.s32.totalorder %s15, 0
    %p128 = por %p126, %p127
    %s129 = ssub.s32 %s16, %s42
    %s130 = ssub.s32 %s17, %s38
    %s131 = sor.u32 %s129, %s130
    %s132 = ssub.s32 %s18, %s34
    %s133 = sor.u32 %s131, %s132
    %p134 = scmp.eq.s32.totalorder %s133, 0
    %s136 = sadd.s32 %s135, 1
    %s137 = scalar_select %p134, %s135, %s136
    %p140 = pneg %p134
    %p141 = scmp.eq.s32.totalorder %s9, 7
    %p142 = por %p140, %p141
    %p143 = scmp.ne.s32.totalorder %s135, %s138
    %p144 = scmp.eq.s32.totalorder %s9, 0
    %p145 = por %p143, %p144
    %p146 = scmp.ne.s32.totalorder %s135, %s138
    %p147 = scmp.eq.s32.totalorder %s14, 7
    %p148 = por %p146, %p147
    %p149 = scmp.ne.s32.totalorder %s138, %s139
    %p150 = scmp.eq.s32.totalorder %s14, 0
    %p151 = por %p149, %p150
    %p152 = scmp.ne.s32.totalorder %s138, %s139
    %p153 = scmp.eq.s32.totalorder %s15, 7
    %p154 = por %p152, %p153
    %p156 = scmp.ne.s32.totalorder %s139, %s155
    %p157 = scmp.eq.s32.totalorder %s15, 0
    %p158 = por %p156, %p157
    %p159 = scmp.le.s32.totalorder 1, %s9
    %p160 = scmp.lt.s32.totalorder %s9, 9
    %p161 = pnand %p159, %p160
    %p162 = pneg %p161
    // Predicated region
    $region9: #{multi_head_self_attention.3} parent=5 // pred_check
      _
    $region10: #{multi_head_self_attention.3} parent=5 // pred_check_branch
      %164 = sbr.rel (%p161) target = $region12
    $region11: #{multi_head_self_attention.3} parent=5 // pred_region
      %s165 = ssub.s32 %s9, 1
    $region12: #{multi_head_self_attention.3} parent=5 // pred_fallthru
      _
    %p166 = scmp.lt.s32.totalorder %s9, 8
    // Predicated region
    $region13: #{multi_head_self_attention.3} parent=5 // pred_check
      %p167 = pneg %p166
    $region14: #{multi_head_self_attention.3} parent=5 // pred_check_branch
      %169 = sbr.rel (%p167) target = $region16
    $region15: #{multi_head_self_attention.3} parent=5 // pred_region
      // Predicated region
      $region17: #{multi_head_self_attention.3} parent=15 // pred_check
        %p170 = pneg %p59
      $region18: #{multi_head_self_attention.3} parent=15 // pred_check_branch
        %172 = sbr.rel (%p170) target = $region20
      $region19: #{multi_head_self_attention.3} parent=15 // pred_region
        %s173 = smul.u32 16, %s18
        %p174 = scmp.lt.s32.totalorder %s16, 1
        %s175 = scalar_select %p174, %s16, 1
        %p176 = scmp.lt.s32.totalorder %s17, 3
        %s177 = scalar_select %p176, %s17, 3
        %p178 = scmp.lt.s32.totalorder %s173, 15
        %s179 = scalar_select %p178, %s173, 15
        %s180 = smul.addr %s177, 16
        %s181 = sadd.s32 %s179, %s180
        %s182 = smul.addr %s175, 64
        %s183 = sadd.s32 %s181, %s182
        %s184 = smul.addr %s183, 8
        %s185 = scalar_lea.vmem %s0, %s184
        %s186 = smul.u32 16, %s18
      $region20: #{multi_head_self_attention.3} parent=15 // pred_fallthru
        _
      // Predicated region
      $region21: #{multi_head_self_attention.3} parent=15 // pred_check
        %p187 = pneg %p87
      $region22: #{multi_head_self_attention.3} parent=15 // pred_check_branch
        %189 = sbr.rel (%p187) target = $region24
      $region23: #{multi_head_self_attention.3} parent=15 // pred_region
        %p190 = scmp.lt.s32.totalorder %s16, 1
        %s191 = scalar_select %p190, %s16, 1
        %p192 = scmp.lt.s32.totalorder %s17, 3
        %s193 = scalar_select %p192, %s17, 3
        %s194 = smul.addr %s193, 16
        %s195 = smul.addr %s191, 64
        %s196 = sadd.s32 %s194, %s195
        %s197 = smul.addr %s196, 8
        %s198 = scalar_lea.vmem %s1, %s197
      $region24: #{multi_head_self_attention.3} parent=15 // pred_fallthru
        _
      // Predicated region
      $region25: #{multi_head_self_attention.3} parent=15 // pred_check
        %p199 = pneg %p115
      $region26: #{multi_head_self_attention.3} parent=15 // pred_check_branch
        %201 = sbr.rel (%p199) target = $region28
      $region27: #{multi_head_self_attention.3} parent=15 // pred_region
        %p202 = scmp.lt.s32.totalorder %s16, 1
        %s203 = scalar_select %p202, %s16, 1
        %p204 = scmp.lt.s32.totalorder %s17, 3
        %s205 = scalar_select %p204, %s17, 3
        %s206 = smul.addr %s205, 16
        %s207 = smul.addr %s203, 64
        %s208 = sadd.s32 %s206, %s207
        %s209 = smul.addr %s208, 8
        %s210 = scalar_lea.vmem %s2, %s209
      $region28: #{multi_head_self_attention.3} parent=15 // pred_fallthru
        _
    $region16: #{multi_head_self_attention.3} parent=5 // pred_fallthru
      _
    %p211 = scmp.le.s32.totalorder 1, %s9
    %p212 = scmp.lt.s32.totalorder %s9, 9
    %p213 = pnand %p211, %p212
    %p214 = pneg %p213
    // Predicated region
    $region29: #{multi_head_self_attention.3} parent=5 // pred_check
      _
    $region30: #{multi_head_self_attention.3} parent=5 // pred_check_branch
      %216 = sbr.rel (%p213) target = $region32
    $region31: #{multi_head_self_attention.3} parent=5 // pred_region
      %s217 = ssub.s32 %s9, 1
      %s218 = smul.u32 16, %s22
      %p219 = scmp.lt.s32.totalorder %s20, 1
      %s220 = scalar_select %p219, %s20, 1
      %p221 = scmp.lt.s32.totalorder %s21, 3
      %s222 = scalar_select %p221, %s21, 3
      %p223 = scmp.lt.s32.totalorder %s218, 15
      %s224 = scalar_select %p223, %s218, 15
      %s225 = smul.addr %s222, 16
      %s226 = sadd.s32 %s224, %s225
      %s227 = smul.addr %s220, 64
      %s228 = sadd.s32 %s226, %s227
      %s229 = smul.addr %s228, 8
      %s230 = scalar_lea.vmem %s0, %s229
      %p231 = pneg %p65
      %p232 = pneg %p62
      %p233 = scmp.lt.s32.totalorder %s20, 1
      %s234 = scalar_select %p233, %s20, 1
      %p235 = scmp.lt.s32.totalorder %s21, 3
      %s236 = scalar_select %p235, %s21, 3
      %s237 = smul.addr %s236, 16
      %s238 = smul.addr %s234, 64
      %s239 = sadd.s32 %s237, %s238
      %s240 = smul.addr %s239, 8
      %s241 = scalar_lea.vmem %s1, %s240
      %p242 = pneg %p93
      %p243 = pneg %p90
      %p244 = scmp.lt.s32.totalorder %s20, 1
      %s245 = scalar_select %p244, %s20, 1
      %p246 = scmp.lt.s32.totalorder %s21, 3
      %s247 = scalar_select %p246, %s21, 3
      %s248 = smul.addr %s247, 16
      %s249 = smul.addr %s245, 64
      %s250 = sadd.s32 %s248, %s249
      %s251 = smul.addr %s250, 8
      %s252 = scalar_lea.vmem %s2, %s251
      %p253 = pneg %p121
      %p254 = pneg %p118
      %p255 = pneg %p151
      %p256 = pneg %p148
      %s257 = smul.u32 16, %s22
      %p258 = scmp.lt.s32.totalorder %s20, 1
      %s259 = scalar_select %p258, %s20, 1
      %p260 = scmp.lt.s32.totalorder %s21, 3
      %s261 = scalar_select %p260, %s21, 3
      %p262 = scmp.lt.s32.totalorder %s257, 15
      %s263 = scalar_select %p262, %s257, 15
      %s264 = smul.addr %s261, 16
      %s265 = sadd.s32 %s263, %s264
      %s266 = smul.addr %s259, 64
      %s267 = sadd.s32 %s265, %s266
      %s268 = smul.addr %s267, 8
      %s269 = scalar_lea.vmem %s3, %s268
      %s270 = smul.u32 16, %s22
      %p271 = scmp.lt.s32.totalorder %s20, 1
      %s272 = scalar_select %p271, %s20, 1
      %p273 = scmp.lt.s32.totalorder %s21, 3
      %s274 = scalar_select %p273, %s21, 3
      %p275 = scmp.lt.s32.totalorder %s270, 15
      %s276 = scalar_select %p275, %s270, 15
      %s277 = smul.addr %s274, 16
      %s278 = sadd.s32 %s276, %s277
      %s279 = smul.addr %s272, 64
      %s280 = sadd.s32 %s278, %s279
      %s281 = smul.addr %s280, 8
      %s282 = scalar_lea.vmem %s0, %s281
      %s283 = smul.u32 16, %s22
      %p284 = scmp.lt.s32.totalorder %s20, 1
      %s285 = scalar_select %p284, %s20, 1
      %p286 = scmp.lt.s32.totalorder %s21, 3
      %s287 = scalar_select %p286, %s21, 3
      %s288 = smul.addr %s287, 16
      %s289 = smul.addr %s285, 64
      %s290 = sadd.s32 %s288, %s289
      %s291 = smul.addr %s290, 8
      %s292 = scalar_lea.vmem %s1, %s291
      %p293 = scmp.lt.s32.totalorder %s20, 1
      %s294 = scalar_select %p293, %s20, 1
      %p295 = scmp.lt.s32.totalorder %s21, 3
      %s296 = scalar_select %p295, %s21, 3
      %s297 = smul.addr %s296, 16
      %s298 = smul.addr %s294, 64
      %s299 = sadd.s32 %s297, %s298
      %s300 = smul.addr %s299, 8
      %s301 = scalar_lea.vmem %s2, %s300
      %s302 = smul.u32 16, %s22
      %p303 = scmp.lt.s32.totalorder %s20, 1
      %s304 = scalar_select %p303, %s20, 1
      %p305 = scmp.lt.s32.totalorder %s21, 3
      %s306 = scalar_select %p305, %s21, 3
      %p307 = scmp.lt.s32.totalorder %s302, 15
      %s308 = scalar_select %p307, %s302, 15
      %s309 = smul.addr %s306, 16
      %s310 = sadd.s32 %s308, %s309
      %s311 = smul.addr %s304, 64
      %s312 = sadd.s32 %s310, %s311
      %s313 = smul.addr %s312, 8
      %s314 = scalar_lea.vmem %s3, %s313
      %s315 = smul.u32 16, %s22
      %p316 = scmp.eq.s32.totalorder %s23, 0
      // Predicated region
      $region33: #{multi_head_self_attention.3} parent=31 // pred_check
        %p317 = pneg %p316
      $region34: #{multi_head_self_attention.3} parent=31 // pred_check_branch
        %319 = sbr.rel (%p317) target = $region36
      $region35: #{multi_head_self_attention.3} parent=31 // pred_region
        %vm320 = vcmask 7168
        %321 = vst.msk [vmem:[#allocation2] sm:$0xff] %vm320, -inf
        %322 = vst.msk [vmem:[#allocation2 + $0x8] sm:$0xff] %vm320, -inf
        %323 = vst.msk [vmem:[#allocation2 + $0x10] sm:$0xff] %vm320, -inf
        %324 = vst.msk [vmem:[#allocation2 + $0x18] sm:$0xff] %vm320, -inf
        %325 = vst.msk [vmem:[#allocation2 + $0x20] sm:$0xff] %vm320, -inf
        %326 = vst.msk [vmem:[#allocation2 + $0x28] sm:$0xff] %vm320, -inf
        %327 = vst.msk [vmem:[#allocation2 + $0x30] sm:$0xff] %vm320, -inf
        %328 = vst.msk [vmem:[#allocation2 + $0x38] sm:$0xff] %vm320, -inf
        %329 = vst.msk [vmem:[#allocation2 + $0x40] sm:$0xff] %vm320, -inf
        %330 = vst.msk [vmem:[#allocation2 + $0x48] sm:$0xff] %vm320, -inf
        %331 = vst.msk [vmem:[#allocation2 + $0x50] sm:$0xff] %vm320, -inf
        %332 = vst.msk [vmem:[#allocation2 + $0x58] sm:$0xff] %vm320, -inf
        %333 = vst.msk [vmem:[#allocation2 + $0x60] sm:$0xff] %vm320, -inf
        %334 = vst.msk [vmem:[#allocation2 + $0x68] sm:$0xff] %vm320, -inf
        %335 = vst.msk [vmem:[#allocation2 + $0x70] sm:$0xff] %vm320, -inf
        %336 = vst.msk [vmem:[#allocation2 + $0x78] sm:$0xff] %vm320, -inf
        %337 = vst.msk [vmem:[#allocation3] sm:$0xff] %vm320, 0.0
        %338 = vst.msk [vmem:[#allocation3 + $0x8] sm:$0xff] %vm320, 0.0
        %339 = vst.msk [vmem:[#allocation3 + $0x10] sm:$0xff] %vm320, 0.0
        %340 = vst.msk [vmem:[#allocation3 + $0x18] sm:$0xff] %vm320, 0.0
        %341 = vst.msk [vmem:[#allocation3 + $0x20] sm:$0xff] %vm320, 0.0
        %342 = vst.msk [vmem:[#allocation3 + $0x28] sm:$0xff] %vm320, 0.0
        %343 = vst.msk [vmem:[#allocation3 + $0x30] sm:$0xff] %vm320, 0.0
        %344 = vst.msk [vmem:[#allocation3 + $0x38] sm:$0xff] %vm320, 0.0
        %345 = vst.msk [vmem:[#allocation3 + $0x40] sm:$0xff] %vm320, 0.0
        %346 = vst.msk [vmem:[#allocation3 + $0x48] sm:$0xff] %vm320, 0.0
        %347 = vst.msk [vmem:[#allocation3 + $0x50] sm:$0xff] %vm320, 0.0
        %348 = vst.msk [vmem:[#allocation3 + $0x58] sm:$0xff] %vm320, 0.0
        %349 = vst.msk [vmem:[#allocation3 + $0x60] sm:$0xff] %vm320, 0.0
        %350 = vst.msk [vmem:[#allocation3 + $0x68] sm:$0xff] %vm320, 0.0
        %351 = vst.msk [vmem:[#allocation3 + $0x70] sm:$0xff] %vm320, 0.0
        %352 = vst.msk [vmem:[#allocation3 + $0x78] sm:$0xff] %vm320, 0.0
        %vm353 = vcmask 64512
        %354 = vst.msk [vmem:[#allocation4] sm:$0xff] %vm353, 0.0
        %355 = vst.msk [vmem:[#allocation4 + $0x8] sm:$0xff] %vm353, 0.0
        %356 = vst.msk [vmem:[#allocation4 + $0x10] sm:$0xff] %vm353, 0.0
        %357 = vst.msk [vmem:[#allocation4 + $0x18] sm:$0xff] %vm353, 0.0
        %358 = vst.msk [vmem:[#allocation4 + $0x20] sm:$0xff] %vm353, 0.0
        %359 = vst.msk [vmem:[#allocation4 + $0x28] sm:$0xff] %vm353, 0.0
        %360 = vst.msk [vmem:[#allocation4 + $0x30] sm:$0xff] %vm353, 0.0
        %361 = vst.msk [vmem:[#allocation4 + $0x38] sm:$0xff] %vm353, 0.0
        %362 = vst.msk [vmem:[#allocation4 + $0x40] sm:$0xff] %vm353, 0.0
        %363 = vst.msk [vmem:[#allocation4 + $0x48] sm:$0xff] %vm353, 0.0
        %364 = vst.msk [vmem:[#allocation4 + $0x50] sm:$0xff] %vm353, 0.0
        %365 = vst.msk [vmem:[#allocation4 + $0x58] sm:$0xff] %vm353, 0.0
        %366 = vst.msk [vmem:[#allocation4 + $0x60] sm:$0xff] %vm353, 0.0
        %367 = vst.msk [vmem:[#allocation4 + $0x68] sm:$0xff] %vm353, 0.0
        %368 = vst.msk [vmem:[#allocation4 + $0x70] sm:$0xff] %vm353, 0.0
        %369 = vst.msk [vmem:[#allocation4 + $0x78] sm:$0xff] %vm353, 0.0
      $region36: #{multi_head_self_attention.3} parent=31 // pred_fallthru
        _
      %s370 = smul.u32 %s23, 128
      %v371 = vld [vmem:[%s282] sm:$0xff]
      %v372 = vld [vmem:[%s282 + $0x8] sm:$0xff]
      %v373 = vld [vmem:[%s282 + $0x10] sm:$0xff]
      %v374 = vld [vmem:[%s282 + $0x18] sm:$0xff]
      %v375 = vld [vmem:[%s282 + $0x20] sm:$0xff]
      %v376 = vld [vmem:[%s282 + $0x28] sm:$0xff]
      %v377 = vld [vmem:[%s282 + $0x30] sm:$0xff]
      %v378 = vld [vmem:[%s282 + $0x38] sm:$0xff]
      %v379 = vld [vmem:[%s282 + $0x40] sm:$0xff]
      %v380 = vld [vmem:[%s282 + $0x48] sm:$0xff]
      %v381 = vld [vmem:[%s282 + $0x50] sm:$0xff]
      %v382 = vld [vmem:[%s282 + $0x58] sm:$0xff]
      %v383 = vld [vmem:[%s282 + $0x60] sm:$0xff]
      %v384 = vld [vmem:[%s282 + $0x68] sm:$0xff]
      %v385 = vld [vmem:[%s282 + $0x70] sm:$0xff]
      %v386 = vld [vmem:[%s282 + $0x78] sm:$0xff]
      %s387 = scalar_lea.vmem %s292, %s370
      %v388 = vld [vmem:[%s387] sm:$0xff]
      %v389 = vld [vmem:[%s387 + $0x8] sm:$0xff]
      %v390 = vld [vmem:[%s387 + $0x10] sm:$0xff]
      %v391 = vld [vmem:[%s387 + $0x18] sm:$0xff]
      %v392 = vld [vmem:[%s387 + $0x20] sm:$0xff]
      %v393 = vld [vmem:[%s387 + $0x28] sm:$0xff]
      %v394 = vld [vmem:[%s387 + $0x30] sm:$0xff]
      %v395 = vld [vmem:[%s387 + $0x38] sm:$0xff]
      %v396 = vld [vmem:[%s387 + $0x40] sm:$0xff]
      %v397 = vld [vmem:[%s387 + $0x48] sm:$0xff]
      %v398 = vld [vmem:[%s387 + $0x50] sm:$0xff]
      %v399 = vld [vmem:[%s387 + $0x58] sm:$0xff]
      %v400 = vld [vmem:[%s387 + $0x60] sm:$0xff]
      %v401 = vld [vmem:[%s387 + $0x68] sm:$0xff]
      %v402 = vld [vmem:[%s387 + $0x70] sm:$0xff]
      %v403 = vld [vmem:[%s387 + $0x78] sm:$0xff]
      %s404 = scalar_lea.vmem %s301, %s370
      %v405 = vld [vmem:[%s404] sm:$0xff]
      %v406 = vld [vmem:[%s404 + $0x8] sm:$0xff]
      %v407 = vld [vmem:[%s404 + $0x10] sm:$0xff]
      %v408 = vld [vmem:[%s404 + $0x18] sm:$0xff]
      %v409 = vld [vmem:[%s404 + $0x20] sm:$0xff]
      %v410 = vld [vmem:[%s404 + $0x28] sm:$0xff]
      %v411 = vld [vmem:[%s404 + $0x30] sm:$0xff]
      %v412 = vld [vmem:[%s404 + $0x38] sm:$0xff]
      %v413 = vld [vmem:[%s404 + $0x40] sm:$0xff]
      %v414 = vld [vmem:[%s404 + $0x48] sm:$0xff]
      %v415 = vld [vmem:[%s404 + $0x50] sm:$0xff]
      %v416 = vld [vmem:[%s404 + $0x58] sm:$0xff]
      %v417 = vld [vmem:[%s404 + $0x60] sm:$0xff]
      %v418 = vld [vmem:[%s404 + $0x68] sm:$0xff]
      %v419 = vld [vmem:[%s404 + $0x70] sm:$0xff]
      %v420 = vld [vmem:[%s404 + $0x78] sm:$0xff]
      %vm421 = vcmask 64512
      %v423 = vsel %vm421, %v371, 0
      %v426 = vsel %vm421, %v372, 0
      %v429 = vsel %vm421, %v373, 0
      %v432 = vsel %vm421, %v374, 0
      %v435 = vsel %vm421, %v375, 0
      %v438 = vsel %vm421, %v376, 0
      %v441 = vsel %vm421, %v377, 0
      %v444 = vsel %vm421, %v378, 0
      %v447 = vsel %vm421, %v379, 0
      %v450 = vsel %vm421, %v380, 0
      %v453 = vsel %vm421, %v381, 0
      %v456 = vsel %vm421, %v382, 0
      %v459 = vsel %vm421, %v383, 0
      %v462 = vsel %vm421, %v384, 0
      %v465 = vsel %vm421, %v385, 0
      %v468 = vsel %vm421, %v386, 0
      %v471 = vsel %vm421, %v388, 0
      %v474 = vsel %vm421, %v389, 0
      %v477 = vsel %vm421, %v390, 0
      %v480 = vsel %vm421, %v391, 0
      %v483 = vsel %vm421, %v392, 0
      %v486 = vsel %vm421, %v393, 0
      %v489 = vsel %vm421, %v394, 0
      %v492 = vsel %vm421, %v395, 0
      %v495 = vsel %vm421, %v396, 0
      %v498 = vsel %vm421, %v397, 0
      %v501 = vsel %vm421, %v398, 0
      %v504 = vsel %vm421, %v399, 0
      %v507 = vsel %vm421, %v400, 0
      %v510 = vsel %vm421, %v401, 0
      %v513 = vsel %vm421, %v402, 0
      %v516 = vsel %vm421, %v403, 0
      %518 = vmatpush.xpose.msra.mxu0 %v516
      %519 = vmatpush.xpose.msra.mxu0 %v513
      %520 = vmatpush.xpose.msra.mxu0 %v510
      %521 = vmatpush.xpose.msra.mxu0 %v507
      %522 = vmatpush.xpose.msra.mxu0 %v504
      %523 = vmatpush.xpose.msra.mxu0 %v501
      %524 = vmatpush.xpose.msra.mxu0 %v498
      %525 = vmatpush.xpose.msra.mxu0 %v495
      %526 = vmatpush.xpose.msra.mxu0 %v492
      %527 = vmatpush.xpose.msra.mxu0 %v489
      %528 = vmatpush.xpose.msra.mxu0 %v486
      %529 = vmatpush.xpose.msra.mxu0 %v483
      %530 = vmatpush.xpose.msra.mxu0 %v480
      %531 = vmatpush.xpose.msra.mxu0 %v477
      %532 = vmatpush.xpose.msra.mxu0 %v474
      %533 = vmatpush.xpose.msra.mxu0 %v471
      %534 = vmatmul.f32.gmra.mxu0 %v423
      %v535 = vpop.f32.mrf.mxu0
      %v536 = vadd.f32 0.0, %v535
      %537 = vmatmul.f32.gmra.mxu0 %v426
      %v538 = vpop.f32.mrf.mxu0
      %v539 = vadd.f32 0.0, %v538
      %540 = vmatmul.f32.gmra.mxu0 %v429
      %v541 = vpop.f32.mrf.mxu0
      %v542 = vadd.f32 0.0, %v541
      %543 = vmatmul.f32.gmra.mxu0 %v432
      %v544 = vpop.f32.mrf.mxu0
      %v545 = vadd.f32 0.0, %v544
      %546 = vmatmul.f32.gmra.mxu0 %v435
      %v547 = vpop.f32.mrf.mxu0
      %v548 = vadd.f32 0.0, %v547
      %549 = vmatmul.f32.gmra.mxu0 %v438
      %v550 = vpop.f32.mrf.mxu0
      %v551 = vadd.f32 0.0, %v550
      %552 = vmatmul.f32.gmra.mxu0 %v441
      %v553 = vpop.f32.mrf.mxu0
      %v554 = vadd.f32 0.0, %v553
      %555 = vmatmul.f32.gmra.mxu0 %v444
      %v556 = vpop.f32.mrf.mxu0
      %v557 = vadd.f32 0.0, %v556
      %558 = vmatmul.f32.gmra.mxu0 %v447
      %v559 = vpop.f32.mrf.mxu0
      %v560 = vadd.f32 0.0, %v559
      %561 = vmatmul.f32.gmra.mxu0 %v450
      %v562 = vpop.f32.mrf.mxu0
      %v563 = vadd.f32 0.0, %v562
      %564 = vmatmul.f32.gmra.mxu0 %v453
      %v565 = vpop.f32.mrf.mxu0
      %v566 = vadd.f32 0.0, %v565
      %567 = vmatmul.f32.gmra.mxu0 %v456
      %v568 = vpop.f32.mrf.mxu0
      %v569 = vadd.f32 0.0, %v568
      %570 = vmatmul.f32.gmra.mxu0 %v459
      %v571 = vpop.f32.mrf.mxu0
      %v572 = vadd.f32 0.0, %v571
      %573 = vmatmul.f32.gmra.mxu0 %v462
      %v574 = vpop.f32.mrf.mxu0
      %v575 = vadd.f32 0.0, %v574
      %576 = vmatmul.f32.gmra.mxu0 %v465
      %v577 = vpop.f32.mrf.mxu0
      %v578 = vadd.f32 0.0, %v577
      %579 = vmatmul.f32.gmra.mxu0 %v468
      %v580 = vpop.f32.mrf.mxu0
      %v581 = vadd.f32 0.0, %v580
      %582 = vdwg.mxu0
      %v583 = vlaneseq
      %v584 = vand.u32 %v583, 127
      %v585 = vstv %s370
      %v586 = vadd.s32 %v585, %v584
      %vm587 = vcmp.lt.s32.totalorder %v586, 8
      %v588 = vsel %vm587, %v536, -1e+30
      %v589 = vsel %vm587, %v539, -1e+30
      %v590 = vsel %vm587, %v542, -1e+30
      %v591 = vsel %vm587, %v545, -1e+30
      %v592 = vsel %vm587, %v548, -1e+30
      %v593 = vsel %vm587, %v551, -1e+30
      %v594 = vsel %vm587, %v554, -1e+30
      %v595 = vsel %vm587, %v557, -1e+30
      %v596 = vsel %vm587, %v560, -1e+30
      %v597 = vsel %vm587, %v563, -1e+30
      %v598 = vsel %vm587, %v566, -1e+30
      %v599 = vsel %vm587, %v569, -1e+30
      %v600 = vsel %vm587, %v572, -1e+30
      %v601 = vsel %vm587, %v575, -1e+30
      %v602 = vsel %vm587, %v578, -1e+30
      %v603 = vsel %vm587, %v581, -1e+30
      %v604 = vld [vmem:[#allocation2] sm:$0xff]
      %v605 = vld [vmem:[#allocation2 + $0x8] sm:$0xff]
      %v606 = vld [vmem:[#allocation2 + $0x10] sm:$0xff]
      %v607 = vld [vmem:[#allocation2 + $0x18] sm:$0xff]
      %v608 = vld [vmem:[#allocation2 + $0x20] sm:$0xff]
      %v609 = vld [vmem:[#allocation2 + $0x28] sm:$0xff]
      %v610 = vld [vmem:[#allocation2 + $0x30] sm:$0xff]
      %v611 = vld [vmem:[#allocation2 + $0x38] sm:$0xff]
      %v612 = vld [vmem:[#allocation2 + $0x40] sm:$0xff]
      %v613 = vld [vmem:[#allocation2 + $0x48] sm:$0xff]
      %v614 = vld [vmem:[#allocation2 + $0x50] sm:$0xff]
      %v615 = vld [vmem:[#allocation2 + $0x58] sm:$0xff]
      %v616 = vld [vmem:[#allocation2 + $0x60] sm:$0xff]
      %v617 = vld [vmem:[#allocation2 + $0x68] sm:$0xff]
      %v618 = vld [vmem:[#allocation2 + $0x70] sm:$0xff]
      %v619 = vld [vmem:[#allocation2 + $0x78] sm:$0xff]
      %620 = vmax.xlane.f32.xlu0 %v588
      %v621 = vpop.xlane.xlu0 %620
      %622 = vmax.xlane.f32.xlu0 %v589
      %v623 = vpop.xlane.xlu0 %622
      %624 = vmax.xlane.f32.xlu0 %v590
      %v625 = vpop.xlane.xlu0 %624
      %626 = vmax.xlane.f32.xlu0 %v591
      %v627 = vpop.xlane.xlu0 %626
      %628 = vmax.xlane.f32.xlu0 %v592
      %v629 = vpop.xlane.xlu0 %628
      %630 = vmax.xlane.f32.xlu0 %v593
      %v631 = vpop.xlane.xlu0 %630
      %632 = vmax.xlane.f32.xlu0 %v594
      %v633 = vpop.xlane.xlu0 %632
      %634 = vmax.xlane.f32.xlu0 %v595
      %v635 = vpop.xlane.xlu0 %634
      %636 = vmax.xlane.f32.xlu0 %v596
      %v637 = vpop.xlane.xlu0 %636
      %638 = vmax.xlane.f32.xlu0 %v597
      %v639 = vpop.xlane.xlu0 %638
      %640 = vmax.xlane.f32.xlu0 %v598
      %v641 = vpop.xlane.xlu0 %640
      %642 = vmax.xlane.f32.xlu0 %v599
      %v643 = vpop.xlane.xlu0 %642
      %644 = vmax.xlane.f32.xlu0 %v600
      %v645 = vpop.xlane.xlu0 %644
      %646 = vmax.xlane.f32.xlu0 %v601
      %v647 = vpop.xlane.xlu0 %646
      %648 = vmax.xlane.f32.xlu0 %v602
      %v649 = vpop.xlane.xlu0 %648
      %650 = vmax.xlane.f32.xlu0 %v603
      %v651 = vpop.xlane.xlu0 %650
      %v652 = vmax.f32 %v604, %v621
      %v653 = vmax.f32 %v605, %v623
      %v654 = vmax.f32 %v606, %v625
      %v655 = vmax.f32 %v607, %v627
      %v656 = vmax.f32 %v608, %v629
      %v657 = vmax.f32 %v609, %v631
      %v658 = vmax.f32 %v610, %v633
      %v659 = vmax.f32 %v611, %v635
      %v660 = vmax.f32 %v612, %v637
      %v661 = vmax.f32 %v613, %v639
      %v662 = vmax.f32 %v614, %v641
      %v663 = vmax.f32 %v615, %v643
      %v664 = vmax.f32 %v616, %v645
      %v665 = vmax.f32 %v617, %v647
      %v666 = vmax.f32 %v618, %v649
      %v667 = vmax.f32 %v619, %v651
      %v668 = vsub.f32 %v604, %v652
      %v669 = vsub.f32 %v605, %v653
      %v670 = vsub.f32 %v606, %v654
      %v671 = vsub.f32 %v607, %v655
      %v672 = vsub.f32 %v608, %v656
      %v673 = vsub.f32 %v609, %v657
      %v674 = vsub.f32 %v610, %v658
      %v675 = vsub.f32 %v611, %v659
      %v676 = vsub.f32 %v612, %v660
      %v677 = vsub.f32 %v613, %v661
      %v678 = vsub.f32 %v614, %v662
      %v679 = vsub.f32 %v615, %v663
      %v680 = vsub.f32 %v616, %v664
      %v681 = vsub.f32 %v617, %v665
      %v682 = vsub.f32 %v618, %v666
      %v683 = vsub.f32 %v619, %v667
      %v684 = vpow.pop %v668
      %v685 = vpow.pop %v669
      %v686 = vpow.pop %v670
      %v687 = vpow.pop %v671
      %v688 = vpow.pop %v672
      %v689 = vpow.pop %v673
      %v690 = vpow.pop %v674
      %v691 = vpow.pop %v675
      %v692 = vpow.pop %v676
      %v693 = vpow.pop %v677
      %v694 = vpow.pop %v678
      %v695 = vpow.pop %v679
      %v696 = vpow.pop %v680
      %v697 = vpow.pop %v681
      %v698 = vpow.pop %v682
      %v699 = vpow.pop %v683
      %701 = vset.pattern.permute.xlu0 0
      %702 = vperm.xlu0 %701, %v652
      %v703 = vpop.permute.xlu0 %702
      %706 = vset.pattern.permute.xlu0 0
      %707 = vperm.xlu0 %706, %v653
      %v708 = vpop.permute.xlu0 %707
      %711 = vset.pattern.permute.xlu0 0
      %712 = vperm.xlu0 %711, %v654
      %v713 = vpop.permute.xlu0 %712
      %716 = vset.pattern.permute.xlu0 0
      %717 = vperm.xlu0 %716, %v655
      %v718 = vpop.permute.xlu0 %717
      %721 = vset.pattern.permute.xlu0 0
      %722 = vperm.xlu0 %721, %v656
      %v723 = vpop.permute.xlu0 %722
      %726 = vset.pattern.permute.xlu0 0
      %727 = vperm.xlu0 %726, %v657
      %v728 = vpop.permute.xlu0 %727
      %731 = vset.pattern.permute.xlu0 0
      %732 = vperm.xlu0 %731, %v658
      %v733 = vpop.permute.xlu0 %732
      %736 = vset.pattern.permute.xlu0 0
      %737 = vperm.xlu0 %736, %v659
      %v738 = vpop.permute.xlu0 %737
      %741 = vset.pattern.permute.xlu0 0
      %742 = vperm.xlu0 %741, %v660
      %v743 = vpop.permute.xlu0 %742
      %746 = vset.pattern.permute.xlu0 0
      %747 = vperm.xlu0 %746, %v661
      %v748 = vpop.permute.xlu0 %747
      %751 = vset.pattern.permute.xlu0 0
      %752 = vperm.xlu0 %751, %v662
      %v753 = vpop.permute.xlu0 %752
      %756 = vset.pattern.permute.xlu0 0
      %757 = vperm.xlu0 %756, %v663
      %v758 = vpop.permute.xlu0 %757
      %761 = vset.pattern.permute.xlu0 0
      %762 = vperm.xlu0 %761, %v664
      %v763 = vpop.permute.xlu0 %762
      %766 = vset.pattern.permute.xlu0 0
      %767 = vperm.xlu0 %766, %v665
      %v768 = vpop.permute.xlu0 %767
      %771 = vset.pattern.permute.xlu0 0
      %772 = vperm.xlu0 %771, %v666
      %v773 = vpop.permute.xlu0 %772
      %776 = vset.pattern.permute.xlu0 0
      %777 = vperm.xlu0 %776, %v667
      %v778 = vpop.permute.xlu0 %777
      %v780 = vsub.f32 %v588, %v703
      %v781 = vsub.f32 %v589, %v708
      %v782 = vsub.f32 %v590, %v713
      %v783 = vsub.f32 %v591, %v718
      %v784 = vsub.f32 %v592, %v723
      %v785 = vsub.f32 %v593, %v728
      %v786 = vsub.f32 %v594, %v733
      %v787 = vsub.f32 %v595, %v738
      %v788 = vsub.f32 %v596, %v743
      %v789 = vsub.f32 %v597, %v748
      %v790 = vsub.f32 %v598, %v753
      %v791 = vsub.f32 %v599, %v758
      %v792 = vsub.f32 %v600, %v763
      %v793 = vsub.f32 %v601, %v768
      %v794 = vsub.f32 %v602, %v773
      %v795 = vsub.f32 %v603, %v778
      %v796 = vpow.pop %v780
      %v797 = vpow.pop %v781
      %v798 = vpow.pop %v782
      %v799 = vpow.pop %v783
      %v800 = vpow.pop %v784
      %v801 = vpow.pop %v785
      %v802 = vpow.pop %v786
      %v803 = vpow.pop %v787
      %v804 = vpow.pop %v788
      %v805 = vpow.pop %v789
      %v806 = vpow.pop %v790
      %v807 = vpow.pop %v791
      %v808 = vpow.pop %v792
      %v809 = vpow.pop %v793
      %v810 = vpow.pop %v794
      %v811 = vpow.pop %v795
      %v812 = vld [vmem:[#allocation3] sm:$0xff]
      %v813 = vld [vmem:[#allocation3 + $0x8] sm:$0xff]
      %v814 = vld [vmem:[#allocation3 + $0x10] sm:$0xff]
      %v815 = vld [vmem:[#allocation3 + $0x18] sm:$0xff]
      %v816 = vld [vmem:[#allocation3 + $0x20] sm:$0xff]
      %v817 = vld [vmem:[#allocation3 + $0x28] sm:$0xff]
      %v818 = vld [vmem:[#allocation3 + $0x30] sm:$0xff]
      %v819 = vld [vmem:[#allocation3 + $0x38] sm:$0xff]
      %v820 = vld [vmem:[#allocation3 + $0x40] sm:$0xff]
      %v821 = vld [vmem:[#allocation3 + $0x48] sm:$0xff]
      %v822 = vld [vmem:[#allocation3 + $0x50] sm:$0xff]
      %v823 = vld [vmem:[#allocation3 + $0x58] sm:$0xff]
      %v824 = vld [vmem:[#allocation3 + $0x60] sm:$0xff]
      %v825 = vld [vmem:[#allocation3 + $0x68] sm:$0xff]
      %v826 = vld [vmem:[#allocation3 + $0x70] sm:$0xff]
      %v827 = vld [vmem:[#allocation3 + $0x78] sm:$0xff]
      %v828 = vmul.f32 %v684, %v812
      %v829 = vmul.f32 %v685, %v813
      %v830 = vmul.f32 %v686, %v814
      %v831 = vmul.f32 %v687, %v815
      %v832 = vmul.f32 %v688, %v816
      %v833 = vmul.f32 %v689, %v817
      %v834 = vmul.f32 %v690, %v818
      %v835 = vmul.f32 %v691, %v819
      %v836 = vmul.f32 %v692, %v820
      %v837 = vmul.f32 %v693, %v821
      %v838 = vmul.f32 %v694, %v822
      %v839 = vmul.f32 %v695, %v823
      %v840 = vmul.f32 %v696, %v824
      %v841 = vmul.f32 %v697, %v825
      %v842 = vmul.f32 %v698, %v826
      %v843 = vmul.f32 %v699, %v827
      %844 = vadd.xlane.f32.xlu0 %v796
      %v845 = vpop.xlane.xlu0 %844
      %846 = vadd.xlane.f32.xlu0 %v797
      %v847 = vpop.xlane.xlu0 %846
      %848 = vadd.xlane.f32.xlu0 %v798
      %v849 = vpop.xlane.xlu0 %848
      %850 = vadd.xlane.f32.xlu0 %v799
      %v851 = vpop.xlane.xlu0 %850
      %852 = vadd.xlane.f32.xlu0 %v800
      %v853 = vpop.xlane.xlu0 %852
      %854 = vadd.xlane.f32.xlu0 %v801
      %v855 = vpop.xlane.xlu0 %854
      %856 = vadd.xlane.f32.xlu0 %v802
      %v857 = vpop.xlane.xlu0 %856
      %858 = vadd.xlane.f32.xlu0 %v803
      %v859 = vpop.xlane.xlu0 %858
      %860 = vadd.xlane.f32.xlu0 %v804
      %v861 = vpop.xlane.xlu0 %860
      %862 = vadd.xlane.f32.xlu0 %v805
      %v863 = vpop.xlane.xlu0 %862
      %864 = vadd.xlane.f32.xlu0 %v806
      %v865 = vpop.xlane.xlu0 %864
      %866 = vadd.xlane.f32.xlu0 %v807
      %v867 = vpop.xlane.xlu0 %866
      %868 = vadd.xlane.f32.xlu0 %v808
      %v869 = vpop.xlane.xlu0 %868
      %870 = vadd.xlane.f32.xlu0 %v809
      %v871 = vpop.xlane.xlu0 %870
      %872 = vadd.xlane.f32.xlu0 %v810
      %v873 = vpop.xlane.xlu0 %872
      %874 = vadd.xlane.f32.xlu0 %v811
      %v875 = vpop.xlane.xlu0 %874
      %v876 = vadd.f32 %v828, %v845
      %v877 = vadd.f32 %v829, %v847
      %v878 = vadd.f32 %v830, %v849
      %v879 = vadd.f32 %v831, %v851
      %v880 = vadd.f32 %v832, %v853
      %v881 = vadd.f32 %v833, %v855
      %v882 = vadd.f32 %v834, %v857
      %v883 = vadd.f32 %v835, %v859
      %v884 = vadd.f32 %v836, %v861
      %v885 = vadd.f32 %v837, %v863
      %v886 = vadd.f32 %v838, %v865
      %v887 = vadd.f32 %v839, %v867
      %v888 = vadd.f32 %v840, %v869
      %v889 = vadd.f32 %v841, %v871
      %v890 = vadd.f32 %v842, %v873
      %v891 = vadd.f32 %v843, %v875
      %vm892 = vcmask 7168
      %893 = vst.msk [vmem:[#allocation3] sm:$0xff] %vm892, %v876
      %894 = vst.msk [vmem:[#allocation3 + $0x8] sm:$0xff] %vm892, %v877
      %895 = vst.msk [vmem:[#allocation3 + $0x10] sm:$0xff] %vm892, %v878
      %896 = vst.msk [vmem:[#allocation3 + $0x18] sm:$0xff] %vm892, %v879
      %897 = vst.msk [vmem:[#allocation3 + $0x20] sm:$0xff] %vm892, %v880
      %898 = vst.msk [vmem:[#allocation3 + $0x28] sm:$0xff] %vm892, %v881
      %899 = vst.msk [vmem:[#allocation3 + $0x30] sm:$0xff] %vm892, %v882
      %900 = vst.msk [vmem:[#allocation3 + $0x38] sm:$0xff] %vm892, %v883
      %901 = vst.msk [vmem:[#allocation3 + $0x40] sm:$0xff] %vm892, %v884
      %902 = vst.msk [vmem:[#allocation3 + $0x48] sm:$0xff] %vm892, %v885
      %903 = vst.msk [vmem:[#allocation3 + $0x50] sm:$0xff] %vm892, %v886
      %904 = vst.msk [vmem:[#allocation3 + $0x58] sm:$0xff] %vm892, %v887
      %905 = vst.msk [vmem:[#allocation3 + $0x60] sm:$0xff] %vm892, %v888
      %906 = vst.msk [vmem:[#allocation3 + $0x68] sm:$0xff] %vm892, %v889
      %907 = vst.msk [vmem:[#allocation3 + $0x70] sm:$0xff] %vm892, %v890
      %908 = vst.msk [vmem:[#allocation3 + $0x78] sm:$0xff] %vm892, %v891
      %v909 = vld [vmem:[#allocation4] sm:$0xff]
      %v910 = vld [vmem:[#allocation4 + $0x8] sm:$0xff]
      %v911 = vld [vmem:[#allocation4 + $0x10] sm:$0xff]
      %v912 = vld [vmem:[#allocation4 + $0x18] sm:$0xff]
      %v913 = vld [vmem:[#allocation4 + $0x20] sm:$0xff]
      %v914 = vld [vmem:[#allocation4 + $0x28] sm:$0xff]
      %v915 = vld [vmem:[#allocation4 + $0x30] sm:$0xff]
      %v916 = vld [vmem:[#allocation4 + $0x38] sm:$0xff]
      %v917 = vld [vmem:[#allocation4 + $0x40] sm:$0xff]
      %v918 = vld [vmem:[#allocation4 + $0x48] sm:$0xff]
      %v919 = vld [vmem:[#allocation4 + $0x50] sm:$0xff]
      %v920 = vld [vmem:[#allocation4 + $0x58] sm:$0xff]
      %v921 = vld [vmem:[#allocation4 + $0x60] sm:$0xff]
      %v922 = vld [vmem:[#allocation4 + $0x68] sm:$0xff]
      %v923 = vld [vmem:[#allocation4 + $0x70] sm:$0xff]
      %v924 = vld [vmem:[#allocation4 + $0x78] sm:$0xff]
      %926 = vset.pattern.permute.xlu0 0
      %927 = vperm.xlu0 %926, %v684
      %v928 = vpop.permute.xlu0 %927
      %931 = vset.pattern.permute.xlu0 0
      %932 = vperm.xlu0 %931, %v685
      %v933 = vpop.permute.xlu0 %932
      %936 = vset.pattern.permute.xlu0 0
      %937 = vperm.xlu0 %936, %v686
      %v938 = vpop.permute.xlu0 %937
      %941 = vset.pattern.permute.xlu0 0
      %942 = vperm.xlu0 %941, %v687
      %v943 = vpop.permute.xlu0 %942
      %946 = vset.pattern.permute.xlu0 0
      %947 = vperm.xlu0 %946, %v688
      %v948 = vpop.permute.xlu0 %947
      %951 = vset.pattern.permute.xlu0 0
      %952 = vperm.xlu0 %951, %v689
      %v953 = vpop.permute.xlu0 %952
      %956 = vset.pattern.permute.xlu0 0
      %957 = vperm.xlu0 %956, %v690
      %v958 = vpop.permute.xlu0 %957
      %961 = vset.pattern.permute.xlu0 0
      %962 = vperm.xlu0 %961, %v691
      %v963 = vpop.permute.xlu0 %962
      %966 = vset.pattern.permute.xlu0 0
      %967 = vperm.xlu0 %966, %v692
      %v968 = vpop.permute.xlu0 %967
      %971 = vset.pattern.permute.xlu0 0
      %972 = vperm.xlu0 %971, %v693
      %v973 = vpop.permute.xlu0 %972
      %976 = vset.pattern.permute.xlu0 0
      %977 = vperm.xlu0 %976, %v694
      %v978 = vpop.permute.xlu0 %977
      %981 = vset.pattern.permute.xlu0 0
      %982 = vperm.xlu0 %981, %v695
      %v983 = vpop.permute.xlu0 %982
      %986 = vset.pattern.permute.xlu0 0
      %987 = vperm.xlu0 %986, %v696
      %v988 = vpop.permute.xlu0 %987
      %991 = vset.pattern.permute.xlu0 0
      %992 = vperm.xlu0 %991, %v697
      %v993 = vpop.permute.xlu0 %992
      %996 = vset.pattern.permute.xlu0 0
      %997 = vperm.xlu0 %996, %v698
      %v998 = vpop.permute.xlu0 %997
      %1001 = vset.pattern.permute.xlu0 0
      %1002 = vperm.xlu0 %1001, %v699
      %v1003 = vpop.permute.xlu0 %1002
      %v1005 = vmul.f32 %v928, %v909
      %v1006 = vmul.f32 %v933, %v910
      %v1007 = vmul.f32 %v938, %v911
      %v1008 = vmul.f32 %v943, %v912
      %v1009 = vmul.f32 %v948, %v913
      %v1010 = vmul.f32 %v953, %v914
      %v1011 = vmul.f32 %v958, %v915
      %v1012 = vmul.f32 %v963, %v916
      %v1013 = vmul.f32 %v968, %v917
      %v1014 = vmul.f32 %v973, %v918
      %v1015 = vmul.f32 %v978, %v919
      %v1016 = vmul.f32 %v983, %v920
      %v1017 = vmul.f32 %v988, %v921
      %v1018 = vmul.f32 %v993, %v922
      %v1019 = vmul.f32 %v998, %v923
      %v1020 = vmul.f32 %v1003, %v924
      %1021 = vmatpush.msra.mxu0 %v420
      %1022 = vmatpush.msra.mxu0 %v419
      %1023 = vmatpush.msra.mxu0 %v418
      %1024 = vmatpush.msra.mxu0 %v417
      %1025 = vmatpush.msra.mxu0 %v416
      %1026 = vmatpush.msra.mxu0 %v415
      %1027 = vmatpush.msra.mxu0 %v414
      %1028 = vmatpush.msra.mxu0 %v413
      %1029 = vmatpush.msra.mxu0 %v412
      %1030 = vmatpush.msra.mxu0 %v411
      %1031 = vmatpush.msra.mxu0 %v410
      %1032 = vmatpush.msra.mxu0 %v409
      %1033 = vmatpush.msra.mxu0 %v408
      %1034 = vmatpush.msra.mxu0 %v407
      %1035 = vmatpush.msra.mxu0 %v406
      %1036 = vmatpush.msra.mxu0 %v405
      %1037 = vmatmul.f32.gmra.mxu0 %v796
      %v1038 = vpop.f32.mrf.mxu0
      %v1039 = vadd.f32 0.0, %v1038
      %1040 = vmatmul.f32.gmra.mxu0 %v797
      %v1041 = vpop.f32.mrf.mxu0
      %v1042 = vadd.f32 0.0, %v1041
      %1043 = vmatmul.f32.gmra.mxu0 %v798
      %v1044 = vpop.f32.mrf.mxu0
      %v1045 = vadd.f32 0.0, %v1044
      %1046 = vmatmul.f32.gmra.mxu0 %v799
      %v1047 = vpop.f32.mrf.mxu0
      %v1048 = vadd.f32 0.0, %v1047
      %1049 = vmatmul.f32.gmra.mxu0 %v800
      %v1050 = vpop.f32.mrf.mxu0
      %v1051 = vadd.f32 0.0, %v1050
      %1052 = vmatmul.f32.gmra.mxu0 %v801
      %v1053 = vpop.f32.mrf.mxu0
      %v1054 = vadd.f32 0.0, %v1053
      %1055 = vmatmul.f32.gmra.mxu0 %v802
      %v1056 = vpop.f32.mrf.mxu0
      %v1057 = vadd.f32 0.0, %v1056
      %1058 = vmatmul.f32.gmra.mxu0 %v803
      %v1059 = vpop.f32.mrf.mxu0
      %v1060 = vadd.f32 0.0, %v1059
      %1061 = vmatmul.f32.gmra.mxu0 %v804
      %v1062 = vpop.f32.mrf.mxu0
      %v1063 = vadd.f32 0.0, %v1062
      %1064 = vmatmul.f32.gmra.mxu0 %v805
      %v1065 = vpop.f32.mrf.mxu0
      %v1066 = vadd.f32 0.0, %v1065
      %1067 = vmatmul.f32.gmra.mxu0 %v806
      %v1068 = vpop.f32.mrf.mxu0
      %v1069 = vadd.f32 0.0, %v1068
      %1070 = vmatmul.f32.gmra.mxu0 %v807
      %v1071 = vpop.f32.mrf.mxu0
      %v1072 = vadd.f32 0.0, %v1071
      %1073 = vmatmul.f32.gmra.mxu0 %v808
      %v1074 = vpop.f32.mrf.mxu0
      %v1075 = vadd.f32 0.0, %v1074
      %1076 = vmatmul.f32.gmra.mxu0 %v809
      %v1077 = vpop.f32.mrf.mxu0
      %v1078 = vadd.f32 0.0, %v1077
      %1079 = vmatmul.f32.gmra.mxu0 %v810
      %v1080 = vpop.f32.mrf.mxu0
      %v1081 = vadd.f32 0.0, %v1080
      %1082 = vmatmul.f32.gmra.mxu0 %v811
      %v1083 = vpop.f32.mrf.mxu0
      %v1084 = vadd.f32 0.0, %v1083
      %1085 = vdwg.mxu0
      %v1086 = vadd.f32 %v1005, %v1039
      %v1087 = vadd.f32 %v1006, %v1042
      %v1088 = vadd.f32 %v1007, %v1045
      %v1089 = vadd.f32 %v1008, %v1048
      %v1090 = vadd.f32 %v1009, %v1051
      %v1091 = vadd.f32 %v1010, %v1054
      %v1092 = vadd.f32 %v1011, %v1057
      %v1093 = vadd.f32 %v1012, %v1060
      %v1094 = vadd.f32 %v1013, %v1063
      %v1095 = vadd.f32 %v1014, %v1066
      %v1096 = vadd.f32 %v1015, %v1069
      %v1097 = vadd.f32 %v1016, %v1072
      %v1098 = vadd.f32 %v1017, %v1075
      %v1099 = vadd.f32 %v1018, %v1078
      %v1100 = vadd.f32 %v1019, %v1081
      %v1101 = vadd.f32 %v1020, %v1084
      %1102 = vst.msk [vmem:[#allocation4] sm:$0xff] %vm421, %v1086
      %1103 = vst.msk [vmem:[#allocation4 + $0x8] sm:$0xff] %vm421, %v1087
      %1104 = vst.msk [vmem:[#allocation4 + $0x10] sm:$0xff] %vm421, %v1088
      %1105 = vst.msk [vmem:[#allocation4 + $0x18] sm:$0xff] %vm421, %v1089
      %1106 = vst.msk [vmem:[#allocation4 + $0x20] sm:$0xff] %vm421, %v1090
      %1107 = vst.msk [vmem:[#allocation4 + $0x28] sm:$0xff] %vm421, %v1091
      %1108 = vst.msk [vmem:[#allocation4 + $0x30] sm:$0xff] %vm421, %v1092
      %1109 = vst.msk [vmem:[#allocation4 + $0x38] sm:$0xff] %vm421, %v1093
      %1110 = vst.msk [vmem:[#allocation4 + $0x40] sm:$0xff] %vm421, %v1094
      %1111 = vst.msk [vmem:[#allocation4 + $0x48] sm:$0xff] %vm421, %v1095
      %1112 = vst.msk [vmem:[#allocation4 + $0x50] sm:$0xff] %vm421, %v1096
      %1113 = vst.msk [vmem:[#allocation4 + $0x58] sm:$0xff] %vm421, %v1097
      %1114 = vst.msk [vmem:[#allocation4 + $0x60] sm:$0xff] %vm421, %v1098
      %1115 = vst.msk [vmem:[#allocation4 + $0x68] sm:$0xff] %vm421, %v1099
      %1116 = vst.msk [vmem:[#allocation4 + $0x70] sm:$0xff] %vm421, %v1100
      %1117 = vst.msk [vmem:[#allocation4 + $0x78] sm:$0xff] %vm421, %v1101
      %1118 = vst.msk [vmem:[#allocation2] sm:$0xff] %vm892, %v652
      %1119 = vst.msk [vmem:[#allocation2 + $0x8] sm:$0xff] %vm892, %v653
      %1120 = vst.msk [vmem:[#allocation2 + $0x10] sm:$0xff] %vm892, %v654
      %1121 = vst.msk [vmem:[#allocation2 + $0x18] sm:$0xff] %vm892, %v655
      %1122 = vst.msk [vmem:[#allocation2 + $0x20] sm:$0xff] %vm892, %v656
      %1123 = vst.msk [vmem:[#allocation2 + $0x28] sm:$0xff] %vm892, %v657
      %1124 = vst.msk [vmem:[#allocation2 + $0x30] sm:$0xff] %vm892, %v658
      %1125 = vst.msk [vmem:[#allocation2 + $0x38] sm:$0xff] %vm892, %v659
      %1126 = vst.msk [vmem:[#allocation2 + $0x40] sm:$0xff] %vm892, %v660
      %1127 = vst.msk [vmem:[#allocation2 + $0x48] sm:$0xff] %vm892, %v661
      %1128 = vst.msk [vmem:[#allocation2 + $0x50] sm:$0xff] %vm892, %v662
      %1129 = vst.msk [vmem:[#allocation2 + $0x58] sm:$0xff] %vm892, %v663
      %1130 = vst.msk [vmem:[#allocation2 + $0x60] sm:$0xff] %vm892, %v664
      %1131 = vst.msk [vmem:[#allocation2 + $0x68] sm:$0xff] %vm892, %v665
      %1132 = vst.msk [vmem:[#allocation2 + $0x70] sm:$0xff] %vm892, %v666
      %1133 = vst.msk [vmem:[#allocation2 + $0x78] sm:$0xff] %vm892, %v667
      // Predicated region
      $region37: #{multi_head_self_attention.3} parent=31 // pred_check
        %p1134 = pneg %p316
      $region38: #{multi_head_self_attention.3} parent=31 // pred_check_branch
        %1136 = sbr.rel (%p1134) target = $region40
      $region39: #{multi_head_self_attention.3} parent=31 // pred_region
        %v1137 = vld [vmem:[#allocation3] sm:$0xff]
        %v1138 = vld [vmem:[#allocation3 + $0x8] sm:$0xff]
        %v1139 = vld [vmem:[#allocation3 + $0x10] sm:$0xff]
        %v1140 = vld [vmem:[#allocation3 + $0x18] sm:$0xff]
        %v1141 = vld [vmem:[#allocation3 + $0x20] sm:$0xff]
        %v1142 = vld [vmem:[#allocation3 + $0x28] sm:$0xff]
        %v1143 = vld [vmem:[#allocation3 + $0x30] sm:$0xff]
        %v1144 = vld [vmem:[#allocation3 + $0x38] sm:$0xff]
        %v1145 = vld [vmem:[#allocation3 + $0x40] sm:$0xff]
        %v1146 = vld [vmem:[#allocation3 + $0x48] sm:$0xff]
        %v1147 = vld [vmem:[#allocation3 + $0x50] sm:$0xff]
        %v1148 = vld [vmem:[#allocation3 + $0x58] sm:$0xff]
        %v1149 = vld [vmem:[#allocation3 + $0x60] sm:$0xff]
        %v1150 = vld [vmem:[#allocation3 + $0x68] sm:$0xff]
        %v1151 = vld [vmem:[#allocation3 + $0x70] sm:$0xff]
        %v1152 = vld [vmem:[#allocation3 + $0x78] sm:$0xff]
        %v1153 = vrcp.pop %v1137
        %v1154 = vrcp.pop %v1138
        %v1155 = vrcp.pop %v1139
        %v1156 = vrcp.pop %v1140
        %v1157 = vrcp.pop %v1141
        %v1158 = vrcp.pop %v1142
        %v1159 = vrcp.pop %v1143
        %v1160 = vrcp.pop %v1144
        %v1161 = vrcp.pop %v1145
        %v1162 = vrcp.pop %v1146
        %v1163 = vrcp.pop %v1147
        %v1164 = vrcp.pop %v1148
        %v1165 = vrcp.pop %v1149
        %v1166 = vrcp.pop %v1150
        %v1167 = vrcp.pop %v1151
        %v1168 = vrcp.pop %v1152
        %v1169 = vld [vmem:[#allocation4] sm:$0xff]
        %v1170 = vld [vmem:[#allocation4 + $0x8] sm:$0xff]
        %v1171 = vld [vmem:[#allocation4 + $0x10] sm:$0xff]
        %v1172 = vld [vmem:[#allocation4 + $0x18] sm:$0xff]
        %v1173 = vld [vmem:[#allocation4 + $0x20] sm:$0xff]
        %v1174 = vld [vmem:[#allocation4 + $0x28] sm:$0xff]
        %v1175 = vld [vmem:[#allocation4 + $0x30] sm:$0xff]
        %v1176 = vld [vmem:[#allocation4 + $0x38] sm:$0xff]
        %v1177 = vld [vmem:[#allocation4 + $0x40] sm:$0xff]
        %v1178 = vld [vmem:[#allocation4 + $0x48] sm:$0xff]
        %v1179 = vld [vmem:[#allocation4 + $0x50] sm:$0xff]
        %v1180 = vld [vmem:[#allocation4 + $0x58] sm:$0xff]
        %v1181 = vld [vmem:[#allocation4 + $0x60] sm:$0xff]
        %v1182 = vld [vmem:[#allocation4 + $0x68] sm:$0xff]
        %v1183 = vld [vmem:[#allocation4 + $0x70] sm:$0xff]
        %v1184 = vld [vmem:[#allocation4 + $0x78] sm:$0xff]
        %1186 = vset.pattern.permute.xlu0 0
        %1187 = vperm.xlu0 %1186, %v1153
        %v1188 = vpop.permute.xlu0 %1187
        %1191 = vset.pattern.permute.xlu0 0
        %1192 = vperm.xlu0 %1191, %v1154
        %v1193 = vpop.permute.xlu0 %1192
        %1196 = vset.pattern.permute.xlu0 0
        %1197 = vperm.xlu0 %1196, %v1155
        %v1198 = vpop.permute.xlu0 %1197
        %1201 = vset.pattern.permute.xlu0 0
        %1202 = vperm.xlu0 %1201, %v1156
        %v1203 = vpop.permute.xlu0 %1202
        %1206 = vset.pattern.permute.xlu0 0
        %1207 = vperm.xlu0 %1206, %v1157
        %v1208 = vpop.permute.xlu0 %1207
        %1211 = vset.pattern.permute.xlu0 0
        %1212 = vperm.xlu0 %1211, %v1158
        %v1213 = vpop.permute.xlu0 %1212
        %1216 = vset.pattern.permute.xlu0 0
        %1217 = vperm.xlu0 %1216, %v1159
        %v1218 = vpop.permute.xlu0 %1217
        %1221 = vset.pattern.permute.xlu0 0
        %1222 = vperm.xlu0 %1221, %v1160
        %v1223 = vpop.permute.xlu0 %1222
        %1226 = vset.pattern.permute.xlu0 0
        %1227 = vperm.xlu0 %1226, %v1161
        %v1228 = vpop.permute.xlu0 %1227
        %1231 = vset.pattern.permute.xlu0 0
        %1232 = vperm.xlu0 %1231, %v1162
        %v1233 = vpop.permute.xlu0 %1232
        %1236 = vset.pattern.permute.xlu0 0
        %1237 = vperm.xlu0 %1236, %v1163
        %v1238 = vpop.permute.xlu0 %1237
        %1241 = vset.pattern.permute.xlu0 0
        %1242 = vperm.xlu0 %1241, %v1164
        %v1243 = vpop.permute.xlu0 %1242
        %1246 = vset.pattern.permute.xlu0 0
        %1247 = vperm.xlu0 %1246, %v1165
        %v1248 = vpop.permute.xlu0 %1247
        %1251 = vset.pattern.permute.xlu0 0
        %1252 = vperm.xlu0 %1251, %v1166
        %v1253 = vpop.permute.xlu0 %1252
        %1256 = vset.pattern.permute.xlu0 0
        %1257 = vperm.xlu0 %1256, %v1167
        %v1258 = vpop.permute.xlu0 %1257
        %1261 = vset.pattern.permute.xlu0 0
        %1262 = vperm.xlu0 %1261, %v1168
        %v1263 = vpop.permute.xlu0 %1262
        %v1265 = vmul.f32 %v1169, %v1188
        %v1266 = vmul.f32 %v1170, %v1193
        %v1267 = vmul.f32 %v1171, %v1198
        %v1268 = vmul.f32 %v1172, %v1203
        %v1269 = vmul.f32 %v1173, %v1208
        %v1270 = vmul.f32 %v1174, %v1213
        %v1271 = vmul.f32 %v1175, %v1218
        %v1272 = vmul.f32 %v1176, %v1223
        %v1273 = vmul.f32 %v1177, %v1228
        %v1274 = vmul.f32 %v1178, %v1233
        %v1275 = vmul.f32 %v1179, %v1238
        %v1276 = vmul.f32 %v1180, %v1243
        %v1277 = vmul.f32 %v1181, %v1248
        %v1278 = vmul.f32 %v1182, %v1253
        %v1279 = vmul.f32 %v1183, %v1258
        %v1280 = vmul.f32 %v1184, %v1263
        %1281 = vst.msk [vmem:[%s314] sm:$0xff] %vm421, %v1265
        %1282 = vst.msk [vmem:[%s314 + $0x8] sm:$0xff] %vm421, %v1266
        %1283 = vst.msk [vmem:[%s314 + $0x10] sm:$0xff] %vm421, %v1267
        %1284 = vst.msk [vmem:[%s314 + $0x18] sm:$0xff] %vm421, %v1268
        %1285 = vst.msk [vmem:[%s314 + $0x20] sm:$0xff] %vm421, %v1269
        %1286 = vst.msk [vmem:[%s314 + $0x28] sm:$0xff] %vm421, %v1270
        %1287 = vst.msk [vmem:[%s314 + $0x30] sm:$0xff] %vm421, %v1271
        %1288 = vst.msk [vmem:[%s314 + $0x38] sm:$0xff] %vm421, %v1272
        %1289 = vst.msk [vmem:[%s314 + $0x40] sm:$0xff] %vm421, %v1273
        %1290 = vst.msk [vmem:[%s314 + $0x48] sm:$0xff] %vm421, %v1274
        %1291 = vst.msk [vmem:[%s314 + $0x50] sm:$0xff] %vm421, %v1275
        %1292 = vst.msk [vmem:[%s314 + $0x58] sm:$0xff] %vm421, %v1276
        %1293 = vst.msk [vmem:[%s314 + $0x60] sm:$0xff] %vm421, %v1277
        %1294 = vst.msk [vmem:[%s314 + $0x68] sm:$0xff] %vm421, %v1278
        %1295 = vst.msk [vmem:[%s314 + $0x70] sm:$0xff] %vm421, %v1279
        %1296 = vst.msk [vmem:[%s314 + $0x78] sm:$0xff] %vm421, %v1280
      $region40: #{multi_head_self_attention.3} parent=31 // pred_fallthru
        _
      %s1297 = smul.u32 16, %s22
      %p1298 = scmp.lt.s32.totalorder %s20, 1
      %s1299 = scalar_select %p1298, %s20, 1
      %p1300 = scmp.lt.s32.totalorder %s21, 3
      %s1301 = scalar_select %p1300, %s21, 3
      %p1302 = scmp.lt.s32.totalorder %s1297, 15
      %s1303 = scalar_select %p1302, %s1297, 15
      %s1304 = smul.addr %s1301, 16
      %s1305 = sadd.s32 %s1303, %s1304
      %s1306 = smul.addr %s1299, 64
      %s1307 = sadd.s32 %s1305, %s1306
      %s1308 = smul.addr %s1307, 8
      %s1309 = scalar_lea.vmem %s3, %s1308
      // Predicated region
      $region41: #{multi_head_self_attention.3} parent=31 // pred_check
        %p1310 = pneg %p148
      $region42: #{multi_head_self_attention.3} parent=31 // pred_check_branch
        %1312 = sbr.rel (%p1310) target = $region44
      $region43: #{multi_head_self_attention.3} parent=31 // pred_region
        %s1313 = smul.u32 16, %s22
      $region44: #{multi_head_self_attention.3} parent=31 // pred_fallthru
        _
    $region32: #{multi_head_self_attention.3} parent=5 // pred_fallthru
      _
    %p1314 = scmp.le.s32.totalorder 2, %s9
    // Predicated region
    $region45: #{multi_head_self_attention.3} parent=5 // pred_check
      %p1315 = pneg %p1314
    $region46: #{multi_head_self_attention.3} parent=5 // pred_check_branch
      %1317 = sbr.rel (%p1315) target = $region48
    $region47: #{multi_head_self_attention.3} parent=5 // pred_region
      %s1318 = ssub.s32 %s9, 2
      // Predicated region
      $region49: #{multi_head_self_attention.3} parent=47 // pred_check
        %p1319 = pneg %p154
      $region50: #{multi_head_self_attention.3} parent=47 // pred_check_branch
        %1321 = sbr.rel (%p1319) target = $region52
      $region51: #{multi_head_self_attention.3} parent=47 // pred_region
        %s1322 = smul.u32 16, %s26
        %p1323 = scmp.lt.s32.totalorder %s24, 1
        %s1324 = scalar_select %p1323, %s24, 1
        %p1325 = scmp.lt.s32.totalorder %s25, 3
        %s1326 = scalar_select %p1325, %s25, 3
        %p1327 = scmp.lt.s32.totalorder %s1322, 15
        %s1328 = scalar_select %p1327, %s1322, 15
        %s1329 = smul.addr %s1326, 16
        %s1330 = sadd.s32 %s1328, %s1329
        %s1331 = smul.addr %s1324, 64
        %s1332 = sadd.s32 %s1330, %s1331
        %s1333 = smul.addr %s1332, 8
        %s1334 = scalar_lea.vmem %s3, %s1333
      $region52: #{multi_head_self_attention.3} parent=47 // pred_fallthru
        _
    $region48: #{multi_head_self_attention.3} parent=5 // pred_fallthru
      _
  $region6: #{multi_head_self_attention.3} parent=0 // loop_footer
    %s13 = sadd.s32 1, %s9
  $region7: #{multi_head_self_attention.3} parent=0 // loop_footer_branch
    %8 = sbr.rel target = $region3
  $region8: #{multi_head_self_attention.3} parent=0 // loop_exit
    _

</llo_original>
